<compile_context>
chip_gen: v7x
topology: tpu7x:2x2x1
jax: 0.10.0
libtpu: 0.0.40
codegen_flags: <defaults>
</compile_context>

<pallas_src>
import functools

import jax
import jax.numpy as jnp
from jax import lax
from jax.experimental import pallas as pl
from jax.experimental.pallas import tpu as pltpu


# ----------------------------- shared in-kernel helpers -----------------------------

def _query_value_heads(q_col, w1_ref, wv1_ref, bv1_ref, wv2_ref, bv2_ref, emb_dim):
    """Query half of doc_scorer layer 1 + the whole value_net (VPU/XLU only, no M=1 MXU)."""
    E = emb_dim
    # cat([q, d]) @ W1 == q @ W1[:E] + d @ W1[E:]  -> query half here, doc half on the MXU.
    hq = jnp.sum(q_col * w1_ref[pl.ds(0, E), :], axis=0, keepdims=True)          # (1, H)
    hv = jnp.maximum(jnp.sum(q_col * wv1_ref[...], axis=0, keepdims=True)
                     + bv1_ref[...], 0.0)                                        # (1, H)
    value = jnp.sum(hv * wv2_ref[...], axis=1, keepdims=True) + bv2_ref[...]     # (1, 1)
    return hq, value


def _score_softmax(doc_embed, hq, w1_ref, b1_ref, w2_ref, b2_ref, emb_dim, temperature):
    E = emb_dim
    hd = jnp.dot(doc_embed, w1_ref[pl.ds(E, E), :],
                 preferred_element_type=jnp.float32)                             # (D, H) MXU
    h = jnp.maximum(hd + hq + b1_ref[...], 0.0)                                  # (D, H)
    # Second layer (H -> 1) as VPU multiply + sublane reduce -> lane-dense (1, D) scores.
    scores = jnp.sum(h.T * w2_ref[...], axis=0, keepdims=True) + b2_ref[...]     # (1, D)
    s = scores * jnp.float32(1.0 / temperature)
    e = jnp.exp(s - jnp.max(s, axis=1, keepdims=True))
    # Exact f32 divide (NOT pl.reciprocal(approx=True)) so probs sum to 1.
    return e / jnp.sum(e, axis=1, keepdims=True)


# ------------------------- fast path: whole table in VMEM ---------------------------

def _retriever_vmem_kernel(ids_ref, emb_ref, qcol_ref,
                           w1_ref, b1_ref, w2_ref, b2_ref,
                           wv1_ref, bv1_ref, wv2_ref, bv2_ref,
                           probs_ref, value_ref,
                           *, num_docs, doc_len, vocab_size, emb_dim, temperature):
    D, L, V, E = num_docs, doc_len, vocab_size, emb_dim

    q_col = qcol_ref[...]                                                        # (E, 1)
    hq, value = _query_value_heads(q_col, w1_ref, wv1_ref, bv1_ref, wv2_ref, bv2_ref, E)
    value_ref[...] = value

    # Gather + per-doc mean pooling folded into a single MXU matmul:
    #   cnt[d, v] = #{l : ids[d, l] == v}   ->   doc_embed = (cnt @ emb) / L
    # (out-of-range ids simply contribute nothing; the wrapper clamps them anyway)
    ids = ids_ref[...]                                                           # (D, L) i32
    lane_v = lax.broadcasted_iota(jnp.int32, (D, V), 1)                          # hoisted once
    cnt = jnp.zeros((D, V), jnp.float32)
    for l in range(L):                                                           # static, small
        cnt = cnt + (lane_v == ids[:, l:l + 1]).astype(jnp.float32)
    doc_embed = jnp.dot(cnt, emb_ref[...],
                        preferred_element_type=jnp.float32) * jnp.float32(1.0 / L)   # (D, E)

    probs_ref[...] = _score_softmax(doc_embed, hq, w1_ref, b1_ref, w2_ref, b2_ref,
                                    E, temperature)


# --------------------- large-vocab path: HBM table, row-DMA gather ------------------

def _retriever_hbm_kernel(ids_ref, emb_hbm, qcol_ref,
                          w1_ref, b1_ref, w2_ref, b2_ref,
                          wv1_ref, bv1_ref, wv2_ref, bv2_ref,
                          probs_ref, value_ref,
                          tok_buf, sem,
                          *, num_docs, doc_len, emb_dim, temperature):
    D, L, E = num_docs, doc_len, emb_dim

    # --- issue all D*L row DMAs back-to-back (ids in SMEM; no div/mod, inner unrolled) ---
    @pl.loop(0, D)
    def _issue_doc(d):
        @pl.loop(0, L, unroll=True)
        def _issue_tok(l):
            pltpu.make_async_copy(emb_hbm.at[ids_ref[d, l]],
                                  tok_buf.at[d, l],
                                  sem.at[0]).start()

    # --- query-only compute overlaps with the in-flight gather DMAs ---
    q_col = qcol_ref[...]
    hq, value = _query_value_heads(q_col, w1_ref, wv1_ref, bv1_ref, wv2_ref, bv2_ref, E)
    value_ref[...] = value

    # --- single accumulated-bytes wait: all row copies signal sem[0]; this descriptor
    #     covers the whole tok_buf, i.e. exactly D*L*E*itemsize bytes == total gathered ---
    pltpu.make_async_copy(tok_buf, tok_buf, sem.at[0]).wait()

    # --- per-doc mean pooling (plain reduce over token axis) + scorer ---
    doc_embed = jnp.sum(tok_buf[...].astype(jnp.float32), axis=1) * jnp.float32(1.0 / L)
    probs_ref[...] = _score_softmax(doc_embed, hq, w1_ref, b1_ref, w2_ref, b2_ref,
                                    E, temperature)


# ------------------------------------- wrapper --------------------------------------

def rl_document_retriever(query_embed, candidates, params, temperature=1.0,
                          *, small_table_bytes=8 * 1024 * 1024):
    """feedback_docs=None path of RLDocumentRetriever.forward.

    Returns (probs (D,1), value (1,), expansion_terms=None).
    """
    # TODO(synk): PRF query expansion (PRFQueryExpander / feedback_docs path) uses a Python
    # dict accumulator, .item() calls and a host-side sorted() top-k; only the
    # feedback_docs=None branch is implemented (expansion_terms is None).
    # TODO(synk): if callers batch multiple queries, add a leading "parallel" grid axis so
    # v7x's two TensorCores are both used and per-call overhead is amortized.
    D, L = candidates.shape
    V, E = params["embedding"].shape
    H = params["w1"].shape[1]
    f32 = jnp.float32

    # Clamp ids so a bad id can never form an out-of-bounds HBM DMA source address.
    ids = jnp.clip(candidates.astype(jnp.int32), 0, V - 1)
    q_col = query_embed.reshape(E, 1).astype(f32)

    w1 = params["w1"].astype(f32)                      # (2E, H), sliced in-kernel
    b1 = params["b1"].reshape(1, H).astype(f32)
    w2 = params["w2"].astype(f32)                      # (H, 1), applied against h.T
    b2 = params["b2"].reshape(1, 1).astype(f32)
    wv1 = params["wv1"].astype(f32)                    # (E, H)
    bv1 = params["bv1"].reshape(1, H).astype(f32)
    wv2 = params["wv2"].reshape(1, H).astype(f32)      # lane-major row
    bv2 = params["bv2"].reshape(1, 1).astype(f32)

    emb = params["embedding"]
    table_bytes = V * E * emb.dtype.itemsize
    weight_bytes = 4 * (2 * E * H + 3 * H + 2 + E * H + H + E + D * L)

    vmem = pl.BlockSpec(memory_space=pltpu.MemorySpace.VMEM)
    smem = pl.BlockSpec(memory_space=pltpu.MemorySpace.SMEM)
    hbm = pl.BlockSpec(memory_space=pl.ANY)
    out_shape = (jax.ShapeDtypeStruct((1, D), f32),    # lane-dense probs row
                 jax.ShapeDtypeStruct((1, 1), f32))

    if table_bytes <= small_table_bytes:
        # Fast path: whole table in VMEM; gather+pool is one count-matrix MXU matmul.
        kernel = functools.partial(_retriever_vmem_kernel, num_docs=D, doc_len=L,
                                   vocab_size=V, emb_dim=E,
                                   temperature=float(temperature))
        need = 4 * V * E + 3 * 4 * D * V + weight_bytes + (1 << 20)
        probs_row, value = pl.pallas_call(
            kernel,
            out_shape=out_shape,
            in_specs=[vmem] * 11,
            out_specs=(vmem, vmem),
            compiler_params=pltpu.CompilerParams(
                vmem_limit_bytes=int(min(64 << 20, max(4 << 20, 2 * need)))),
        )(ids, emb.astype(f32), q_col, w1, b1, w2, b2, wv1, bv1, wv2, bv2)
    else:
        # Large-vocab path: table stays in HBM; only D*L rows are gathered via DMA.
        kernel = functools.partial(_retriever_hbm_kernel, num_docs=D, doc_len=L,
                                   emb_dim=E, temperature=float(temperature))
        need = D * L * E * emb.dtype.itemsize + weight_bytes + (1 << 20)
        probs_row, value = pl.pallas_call(
            kernel,
            out_shape=out_shape,
            in_specs=[smem, hbm] + [vmem] * 9,
            out_specs=(vmem, vmem),
            scratch_shapes=[pltpu.VMEM((D, L, E), emb.dtype),   # native dtype (bf16-friendly)
                            pltpu.SemaphoreType.DMA((1,))],
            compiler_params=pltpu.CompilerParams(
                vmem_limit_bytes=int(min(64 << 20, max(4 << 20, 2 * need)))),
        )(ids, emb, q_col, w1, b1, w2, b2, wv1, bv1, wv2, bv2)

    return probs_row.reshape(D, 1), value.reshape(1), None


# ----------------------------------- references -------------------------------------

def reference(query_embed, candidates, params, temperature=1.0):
    """Pure-JAX reference with identical semantics to the PyTorch module."""
    emb = params["embedding"]
    tok_emb = jnp.take(emb, candidates, axis=0)                 # (D, L, E)
    doc_embed = tok_emb.mean(axis=1)                            # (D, E)
    q = query_embed.reshape(1, -1)
    x = jnp.concatenate([jnp.broadcast_to(q, doc_embed.shape), doc_embed], axis=-1)
    h = jnp.maximum(x @ params["w1"] + params["b1"], 0.0)
    scores = h @ params["w2"] + params["b2"]                    # (D, 1)
    probs = jax.nn.softmax(scores / temperature, axis=0)
    hv = jnp.maximum(q @ params["wv1"] + params["bv1"], 0.0)
    value = (hv @ params["wv2"] + params["bv2"]).reshape(1)
    return probs, value


def init_params(key, vocab_size, embedding_dim, hidden_dim):
    ks = jax.random.split(key, 9)
    s = 0.1
    return {
        "embedding": jax.random.normal(ks[0], (vocab_size, embedding_dim), jnp.float32) * s,
        # doc_scorer: Linear(2E, H) -> ReLU -> Linear(H, 1)
        "w1": jax.random.normal(ks[1], (2 * embedding_dim, hidden_dim), jnp.float32) * s,
        "b1": jax.random.normal(ks[2], (hidden_dim,), jnp.float32) * s,
        "w2": jax.random.normal(ks[3], (hidden_dim, 1), jnp.float32) * s,
        "b2": jax.random.normal(ks[4], (1,), jnp.float32) * s,
        # value_net: Linear(E, H) -> ReLU -> Linear(H, 1)
        "wv1": jax.random.normal(ks[5], (embedding_dim, hidden_dim), jnp.float32) * s,
        "bv1": jax.random.normal(ks[6], (hidden_dim,), jnp.float32) * s,
        "wv2": jax.random.normal(ks[7], (hidden_dim, 1), jnp.float32) * s,
        "bv2": jax.random.normal(ks[8], (1,), jnp.float32) * s,
    }


if __name__ == "__main__":
    vocab_size, embedding_dim, hidden_dim = 1024, 32, 32
    num_docs, doc_len = 8, 16
    temperature = 1.0

    key = jax.random.PRNGKey(0)
    k_params, k_query, k_cands = jax.random.split(key, 3)

    params = init_params(k_params, vocab_size, embedding_dim, hidden_dim)
    # feedback_docs=None path: `query` is already an embedding-space vector.
    query_embed = jax.random.normal(k_query, (embedding_dim,), jnp.float32)
    candidates = jax.random.randint(k_cands, (num_docs, doc_len), 0, vocab_size, jnp.int32)

    probs, value, expansion_terms = rl_document_retriever(
        query_embed, candidates, params, temperature=temperature)
    jax.block_until_ready((probs, value))

    probs_ref, value_ref = reference(query_embed, candidates, params, temperature)
    assert probs.shape == (num_docs, 1) and value.shape == (1,)
    assert expansion_terms is None
    assert jnp.allclose(probs, probs_ref, atol=1e-4, rtol=1e-4)
    assert jnp.allclose(value, value_ref, atol=1e-5, rtol=1e-5)
    # Exact f32 divide in the softmax -> probs sum to 1 to f32 precision.
    assert jnp.allclose(jnp.sum(probs), 1.0, atol=1e-5)

    print("KERNEL_OK")
</pallas_src>

<mosaic_0001>
module attributes {stable_mosaic.version = 11 : i64} {
  func.func @_retriever_vmem_kernel(%arg0: memref<8x16xi32, #tpu.memory_space<vmem>>, %arg1: memref<1024x32xf32, #tpu.memory_space<vmem>>, %arg2: memref<32x1xf32, #tpu.memory_space<vmem>>, %arg3: memref<64x32xf32, #tpu.memory_space<vmem>>, %arg4: memref<1x32xf32, #tpu.memory_space<vmem>>, %arg5: memref<32x1xf32, #tpu.memory_space<vmem>>, %arg6: memref<1x1xf32, #tpu.memory_space<vmem>>, %arg7: memref<32x32xf32, #tpu.memory_space<vmem>>, %arg8: memref<1x32xf32, #tpu.memory_space<vmem>>, %arg9: memref<1x32xf32, #tpu.memory_space<vmem>>, %arg10: memref<1x1xf32, #tpu.memory_space<vmem>>, %arg11: memref<1x8xf32, #tpu.memory_space<vmem>>, %arg12: memref<1x1xf32, #tpu.memory_space<vmem>>) attributes {dimension_semantics = [], scalar_prefetch = 0 : i64, scratch_operands = 0 : i64, tpu.core_type = #tpu.core_type<tc>} {
    %c0 = arith.constant 0 : index
    %c0_0 = arith.constant 0 : index
    %0 = vector.load %arg2[%c0, %c0_0] : memref<32x1xf32, #tpu.memory_space<vmem>>, vector<32x1xf32>
    %c0_1 = arith.constant 0 : index
    %c0_2 = arith.constant 0 : index
    %1 = vector.load %arg3[%c0_1, %c0_2] : memref<64x32xf32, #tpu.memory_space<vmem>>, vector<32x32xf32>
    %2 = vector.broadcast %0 : vector<32x1xf32> to vector<32x32xf32>
    %3 = arith.mulf %2, %1 : vector<32x32xf32>
    %cst = arith.constant dense<0.000000e+00> : vector<32xf32>
    %4 = vector.multi_reduction <add>, %3, %cst [0] : vector<32x32xf32> to vector<32xf32>
    %5 = vector.shape_cast %4 : vector<32xf32> to vector<1x32xf32>
    %c0_3 = arith.constant 0 : index
    %c0_4 = arith.constant 0 : index
    %6 = vector.load %arg7[%c0_3, %c0_4] : memref<32x32xf32, #tpu.memory_space<vmem>>, vector<32x32xf32>
    %7 = vector.broadcast %0 : vector<32x1xf32> to vector<32x32xf32>
    %8 = arith.mulf %7, %6 : vector<32x32xf32>
    %cst_5 = arith.constant dense<0.000000e+00> : vector<32xf32>
    %9 = vector.multi_reduction <add>, %8, %cst_5 [0] : vector<32x32xf32> to vector<32xf32>
    %10 = vector.shape_cast %9 : vector<32xf32> to vector<1x32xf32>
    %c0_6 = arith.constant 0 : index
    %c0_7 = arith.constant 0 : index
    %11 = vector.load %arg8[%c0_6, %c0_7] : memref<1x32xf32, #tpu.memory_space<vmem>>, vector<1x32xf32>
    %12 = arith.addf %10, %11 : vector<1x32xf32>
    %cst_8 = arith.constant 0.000000e+00 : f32
    %13 = vector.broadcast %cst_8 : f32 to vector<1x32xf32>
    %14 = arith.maximumf %12, %13 : vector<1x32xf32>
    %c0_9 = arith.constant 0 : index
    %c0_10 = arith.constant 0 : index
    %15 = vector.load %arg9[%c0_9, %c0_10] : memref<1x32xf32, #tpu.memory_space<vmem>>, vector<1x32xf32>
    %16 = arith.mulf %14, %15 : vector<1x32xf32>
    %cst_11 = arith.constant dense<0.000000e+00> : vector<1xf32>
    %17 = vector.multi_reduction <add>, %16, %cst_11 [1] : vector<1x32xf32> to vector<1xf32>
    %18 = vector.shape_cast %17 : vector<1xf32> to vector<1x1xf32>
    %c0_12 = arith.constant 0 : index
    %c0_13 = arith.constant 0 : index
    %19 = vector.load %arg10[%c0_12, %c0_13] : memref<1x1xf32, #tpu.memory_space<vmem>>, vector<1x1xf32>
    %20 = arith.addf %18, %19 : vector<1x1xf32>
    %c0_14 = arith.constant 0 : index
    %c0_15 = arith.constant 0 : index
    %21 = vector.load %arg12[%c0_14, %c0_15] : memref<1x1xf32, #tpu.memory_space<vmem>>, vector<1x1xf32>
    tpu.vector_store %arg12[%c0_14, %c0_15], %20 {strides = array<i32>} : memref<1x1xf32, #tpu.memory_space<vmem>>, vector<1x1xf32>,
    %c0_16 = arith.constant 0 : index
    %c0_17 = arith.constant 0 : index
    %22 = vector.load %arg0[%c0_16, %c0_17] : memref<8x16xi32, #tpu.memory_space<vmem>>, vector<8x16xi32>
    %23 = tpu.iota {dimensions = array<i32: 1>} : vector<8x1024xi32>
    %cst_18 = arith.constant 0.000000e+00 : f32
    %24 = vector.broadcast %cst_18 : f32 to vector<8x1024xf32>
    %25 = vector.extract_strided_slice %22 {offsets = [0, 0], sizes = [8, 1], strides = [1, 1]} : vector<8x16xi32> to vector<8x1xi32>
    %26 = vector.broadcast %25 : vector<8x1xi32> to vector<8x1024xi32>
    %27 = arith.cmpi eq, %23, %26 : vector<8x1024xi32>
    %28 = arith.extui %27 : vector<8x1024xi1> to vector<8x1024xi32>
    %29 = arith.sitofp %28 : vector<8x1024xi32> to vector<8x1024xf32>
    %30 = arith.addf %24, %29 : vector<8x1024xf32>
    %31 = vector.extract_strided_slice %22 {offsets = [0, 1], sizes = [8, 1], strides = [1, 1]} : vector<8x16xi32> to vector<8x1xi32>
    %32 = vector.broadcast %31 : vector<8x1xi32> to vector<8x1024xi32>
    %33 = arith.cmpi eq, %23, %32 : vector<8x1024xi32>
    %34 = arith.extui %33 : vector<8x1024xi1> to vector<8x1024xi32>
    %35 = arith.sitofp %34 : vector<8x1024xi32> to vector<8x1024xf32>
    %36 = arith.addf %30, %35 : vector<8x1024xf32>
    %37 = vector.extract_strided_slice %22 {offsets = [0, 2], sizes = [8, 1], strides = [1, 1]} : vector<8x16xi32> to vector<8x1xi32>
    %38 = vector.broadcast %37 : vector<8x1xi32> to vector<8x1024xi32>
    %39 = arith.cmpi eq, %23, %38 : vector<8x1024xi32>
    %40 = arith.extui %39 : vector<8x1024xi1> to vector<8x1024xi32>
    %41 = arith.sitofp %40 : vector<8x1024xi32> to vector<8x1024xf32>
    %42 = arith.addf %36, %41 : vector<8x1024xf32>
    %43 = vector.extract_strided_slice %22 {offsets = [0, 3], sizes = [8, 1], strides = [1, 1]} : vector<8x16xi32> to vector<8x1xi32>
    %44 = vector.broadcast %43 : vector<8x1xi32> to vector<8x1024xi32>
    %45 = arith.cmpi eq, %23, %44 : vector<8x1024xi32>
    %46 = arith.extui %45 : vector<8x1024xi1> to vector<8x1024xi32>
    %47 = arith.sitofp %46 : vector<8x1024xi32> to vector<8x1024xf32>
    %48 = arith.addf %42, %47 : vector<8x1024xf32>
    %49 = vector.extract_strided_slice %22 {offsets = [0, 4], sizes = [8, 1], strides = [1, 1]} : vector<8x16xi32> to vector<8x1xi32>
    %50 = vector.broadcast %49 : vector<8x1xi32> to vector<8x1024xi32>
    %51 = arith.cmpi eq, %23, %50 : vector<8x1024xi32>
    %52 = arith.extui %51 : vector<8x1024xi1> to vector<8x1024xi32>
    %53 = arith.sitofp %52 : vector<8x1024xi32> to vector<8x1024xf32>
    %54 = arith.addf %48, %53 : vector<8x1024xf32>
    %55 = vector.extract_strided_slice %22 {offsets = [0, 5], sizes = [8, 1], strides = [1, 1]} : vector<8x16xi32> to vector<8x1xi32>
    %56 = vector.broadcast %55 : vector<8x1xi32> to vector<8x1024xi32>
    %57 = arith.cmpi eq, %23, %56 : vector<8x1024xi32>
    %58 = arith.extui %57 : vector<8x1024xi1> to vector<8x1024xi32>
    %59 = arith.sitofp %58 : vector<8x1024xi32> to vector<8x1024xf32>
    %60 = arith.addf %54, %59 : vector<8x1024xf32>
    %61 = vector.extract_strided_slice %22 {offsets = [0, 6], sizes = [8, 1], strides = [1, 1]} : vector<8x16xi32> to vector<8x1xi32>
    %62 = vector.broadcast %61 : vector<8x1xi32> to vector<8x1024xi32>
    %63 = arith.cmpi eq, %23, %62 : vector<8x1024xi32>
    %64 = arith.extui %63 : vector<8x1024xi1> to vector<8x1024xi32>
    %65 = arith.sitofp %64 : vector<8x1024xi32> to vector<8x1024xf32>
    %66 = arith.addf %60, %65 : vector<8x1024xf32>
    %67 = vector.extract_strided_slice %22 {offsets = [0, 7], sizes = [8, 1], strides = [1, 1]} : vector<8x16xi32> to vector<8x1xi32>
    %68 = vector.broadcast %67 : vector<8x1xi32> to vector<8x1024xi32>
    %69 = arith.cmpi eq, %23, %68 : vector<8x1024xi32>
    %70 = arith.extui %69 : vector<8x1024xi1> to vector<8x1024xi32>
    %71 = arith.sitofp %70 : vector<8x1024xi32> to vector<8x1024xf32>
    %72 = arith.addf %66, %71 : vector<8x1024xf32>
    %73 = vector.extract_strided_slice %22 {offsets = [0, 8], sizes = [8, 1], strides = [1, 1]} : vector<8x16xi32> to vector<8x1xi32>
    %74 = vector.broadcast %73 : vector<8x1xi32> to vector<8x1024xi32>
    %75 = arith.cmpi eq, %23, %74 : vector<8x1024xi32>
    %76 = arith.extui %75 : vector<8x1024xi1> to vector<8x1024xi32>
    %77 = arith.sitofp %76 : vector<8x1024xi32> to vector<8x1024xf32>
    %78 = arith.addf %72, %77 : vector<8x1024xf32>
    %79 = vector.extract_strided_slice %22 {offsets = [0, 9], sizes = [8, 1], strides = [1, 1]} : vector<8x16xi32> to vector<8x1xi32>
    %80 = vector.broadcast %79 : vector<8x1xi32> to vector<8x1024xi32>
    %81 = arith.cmpi eq, %23, %80 : vector<8x1024xi32>
    %82 = arith.extui %81 : vector<8x1024xi1> to vector<8x1024xi32>
    %83 = arith.sitofp %82 : vector<8x1024xi32> to vector<8x1024xf32>
    %84 = arith.addf %78, %83 : vector<8x1024xf32>
    %85 = vector.extract_strided_slice %22 {offsets = [0, 10], sizes = [8, 1], strides = [1, 1]} : vector<8x16xi32> to vector<8x1xi32>
    %86 = vector.broadcast %85 : vector<8x1xi32> to vector<8x1024xi32>
    %87 = arith.cmpi eq, %23, %86 : vector<8x1024xi32>
    %88 = arith.extui %87 : vector<8x1024xi1> to vector<8x1024xi32>
    %89 = arith.sitofp %88 : vector<8x1024xi32> to vector<8x1024xf32>
    %90 = arith.addf %84, %89 : vector<8x1024xf32>
    %91 = vector.extract_strided_slice %22 {offsets = [0, 11], sizes = [8, 1], strides = [1, 1]} : vector<8x16xi32> to vector<8x1xi32>
    %92 = vector.broadcast %91 : vector<8x1xi32> to vector<8x1024xi32>
    %93 = arith.cmpi eq, %23, %92 : vector<8x1024xi32>
    %94 = arith.extui %93 : vector<8x1024xi1> to vector<8x1024xi32>
    %95 = arith.sitofp %94 : vector<8x1024xi32> to vector<8x1024xf32>
    %96 = arith.addf %90, %95 : vector<8x1024xf32>
    %97 = vector.extract_strided_slice %22 {offsets = [0, 12], sizes = [8, 1], strides = [1, 1]} : vector<8x16xi32> to vector<8x1xi32>
    %98 = vector.broadcast %97 : vector<8x1xi32> to vector<8x1024xi32>
    %99 = arith.cmpi eq, %23, %98 : vector<8x1024xi32>
    %100 = arith.extui %99 : vector<8x1024xi1> to vector<8x1024xi32>
    %101 = arith.sitofp %100 : vector<8x1024xi32> to vector<8x1024xf32>
    %102 = arith.addf %96, %101 : vector<8x1024xf32>
    %103 = vector.extract_strided_slice %22 {offsets = [0, 13], sizes = [8, 1], strides = [1, 1]} : vector<8x16xi32> to vector<8x1xi32>
    %104 = vector.broadcast %103 : vector<8x1xi32> to vector<8x1024xi32>
    %105 = arith.cmpi eq, %23, %104 : vector<8x1024xi32>
    %106 = arith.extui %105 : vector<8x1024xi1> to vector<8x1024xi32>
    %107 = arith.sitofp %106 : vector<8x1024xi32> to vector<8x1024xf32>
    %108 = arith.addf %102, %107 : vector<8x1024xf32>
    %109 = vector.extract_strided_slice %22 {offsets = [0, 14], sizes = [8, 1], strides = [1, 1]} : vector<8x16xi32> to vector<8x1xi32>
    %110 = vector.broadcast %109 : vector<8x1xi32> to vector<8x1024xi32>
    %111 = arith.cmpi eq, %23, %110 : vector<8x1024xi32>
    %112 = arith.extui %111 : vector<8x1024xi1> to vector<8x1024xi32>
    %113 = arith.sitofp %112 : vector<8x1024xi32> to vector<8x1024xf32>
    %114 = arith.addf %108, %113 : vector<8x1024xf32>
    %115 = vector.extract_strided_slice %22 {offsets = [0, 15], sizes = [8, 1], strides = [1, 1]} : vector<8x16xi32> to vector<8x1xi32>
    %116 = vector.broadcast %115 : vector<8x1xi32> to vector<8x1024xi32>
    %117 = arith.cmpi eq, %23, %116 : vector<8x1024xi32>
    %118 = arith.extui %117 : vector<8x1024xi1> to vector<8x1024xi32>
    %119 = arith.sitofp %118 : vector<8x1024xi32> to vector<8x1024xf32>
    %120 = arith.addf %114, %119 : vector<8x1024xf32>
    %c0_19 = arith.constant 0 : index
    %c0_20 = arith.constant 0 : index
    %121 = vector.load %arg1[%c0_19, %c0_20] : memref<1024x32xf32, #tpu.memory_space<vmem>>, vector<1024x32xf32>
    %cst_21 = arith.constant dense<0.000000e+00> : vector<8x32xf32>
    %122 = tpu.matmul %120, %121, %cst_21 {dimension_numbers = #tpu.dot_dimension_numbers<[1], [0], [0], [1], [0, 0, 1, 1], [], []>} : vector<8x1024xf32>, vector<1024x32xf32>, vector<8x32xf32> -> vector<8x32xf32>
    %cst_22 = arith.constant 6.250000e-02 : f32
    %123 = vector.broadcast %cst_22 : f32 to vector<8x32xf32>
    %124 = arith.mulf %122, %123 : vector<8x32xf32>
    %c32 = arith.constant 32 : index
    %c0_23 = arith.constant 0 : index
    %125 = vector.load %arg3[%c32, %c0_23] : memref<64x32xf32, #tpu.memory_space<vmem>>, vector<32x32xf32>
    %cst_24 = arith.constant dense<0.000000e+00> : vector<8x32xf32>
    %126 = tpu.matmul %124, %125, %cst_24 {dimension_numbers = #tpu.dot_dimension_numbers<[1], [0], [0], [1], [0, 0, 1, 1], [], []>} : vector<8x32xf32>, vector<32x32xf32>, vector<8x32xf32> -> vector<8x32xf32>
    %127 = vector.broadcast %5 : vector<1x32xf32> to vector<8x32xf32>
    %128 = arith.addf %126, %127 : vector<8x32xf32>
    %c0_25 = arith.constant 0 : index
    %c0_26 = arith.constant 0 : index
    %129 = vector.load %arg4[%c0_25, %c0_26] : memref<1x32xf32, #tpu.memory_space<vmem>>, vector<1x32xf32>
    %130 = vector.broadcast %129 : vector<1x32xf32> to vector<8x32xf32>
    %131 = arith.addf %128, %130 : vector<8x32xf32>
    %cst_27 = arith.constant 0.000000e+00 : f32
    %132 = vector.broadcast %cst_27 : f32 to vector<8x32xf32>
    %133 = arith.maximumf %131, %132 : vector<8x32xf32>
    %134 = tpu.transpose %133, [1, 0] : vector<8x32xf32> -> vector<32x8xf32>
    %c0_28 = arith.constant 0 : index
    %c0_29 = arith.constant 0 : index
    %135 = vector.load %arg5[%c0_28, %c0_29] : memref<32x1xf32, #tpu.memory_space<vmem>>, vector<32x1xf32>
    %136 = vector.broadcast %135 : vector<32x1xf32> to vector<32x8xf32>
    %137 = arith.mulf %134, %136 : vector<32x8xf32>
    %cst_30 = arith.constant dense<0.000000e+00> : vector<8xf32>
    %138 = vector.multi_reduction <add>, %137, %cst_30 [0] : vector<32x8xf32> to vector<8xf32>
    %139 = vector.shape_cast %138 : vector<8xf32> to vector<1x8xf32>
    %c0_31 = arith.constant 0 : index
    %c0_32 = arith.constant 0 : index
    %140 = vector.load %arg6[%c0_31, %c0_32] : memref<1x1xf32, #tpu.memory_space<vmem>>, vector<1x1xf32>
    %141 = vector.broadcast %140 : vector<1x1xf32> to vector<1x8xf32>
    %142 = arith.addf %139, %141 : vector<1x8xf32>
    %cst_33 = arith.constant 1.000000e+00 : f32
    %143 = vector.broadcast %cst_33 : f32 to vector<1x8xf32>
    %144 = arith.mulf %142, %143 : vector<1x8xf32>
    %cst_34 = arith.constant dense<0xFF800000> : vector<1xf32>
    %145 = vector.multi_reduction <maximumf>, %144, %cst_34 [1] : vector<1x8xf32> to vector<1xf32>
    %146 = vector.shape_cast %145 : vector<1xf32> to vector<1x1xf32>
    %147 = vector.broadcast %146 : vector<1x1xf32> to vector<1x8xf32>
    %148 = arith.subf %144, %147 : vector<1x8xf32>
    %149 = math.exp %148 : vector<1x8xf32>
    %cst_35 = arith.constant dense<0.000000e+00> : vector<1xf32>
    %150 = vector.multi_reduction <add>, %149, %cst_35 [1] : vector<1x8xf32> to vector<1xf32>
    %151 = vector.shape_cast %150 : vector<1xf32> to vector<1x1xf32>
    %152 = vector.broadcast %151 : vector<1x1xf32> to vector<1x8xf32>
    %153 = arith.divf %149, %152 : vector<1x8xf32>
    %c0_36 = arith.constant 0 : index
    %c0_37 = arith.constant 0 : index
    %154 = vector.load %arg11[%c0_36, %c0_37] : memref<1x8xf32, #tpu.memory_space<vmem>>, vector<1x8xf32>
    tpu.vector_store %arg11[%c0_36, %c0_37], %153 {strides = array<i32>} : memref<1x8xf32, #tpu.memory_space<vmem>>, vector<1x8xf32>,
    return
  }
}

</mosaic_0001>

<llo_original>
// kernel: tpu_custom_call.1
$region0: #{tpu_custom_call.1}
  #allocation0 [shape = 'u32[]', space=smem, size = 0x4, offset = 0x4, fixed_abs, tag = 'smem constant byte address 0x4 - core index']
  #allocation1 [shape = 'u32[144,128]{1,0:T(1,128)}', space=vmem, size = 0x12000, scoped, tag = 'internal scratch']
  #allocation2 [shape = 'f32[1,1]{1,0:T(1,128)S(1)}', space=vmem, size = 0x200, scoped, tag = 'scoped memory for tpu_custom_call.1']
  #allocation3 [shape = 'f32[1,1]{1,0:T(1,128)S(1)}', space=vmem, size = 0x200, scoped, tag = 'scoped memory for tpu_custom_call.1']
  %s0 = inlined_call_operand.vmem [shape: s32[8,16], index: 0, kind: input, shape index: {}]
  %s1 = inlined_call_operand.vmem [shape: f32[1024,32], index: 1, kind: input, shape index: {}]
  %s2 = inlined_call_operand.vmem [shape: f32[32,1], index: 2, kind: input, shape index: {}]
  %s3 = inlined_call_operand.vmem [shape: f32[64,32], index: 3, kind: input, shape index: {}]
  %s4 = inlined_call_operand.vmem [shape: f32[1,32], index: 4, kind: input, shape index: {}]
  %s5 = inlined_call_operand.vmem [shape: f32[32,1], index: 5, kind: input, shape index: {}]
  %s6 = inlined_call_operand.<no memory space> [shape: f32[1,1], index: 6, kind: input, shape index: {}]
  %s7 = inlined_call_operand.vmem [shape: f32[32,32], index: 7, kind: input, shape index: {}]
  %s8 = inlined_call_operand.vmem [shape: f32[1,32], index: 8, kind: input, shape index: {}]
  %s9 = inlined_call_operand.vmem [shape: f32[1,32], index: 9, kind: input, shape index: {}]
  %s10 = inlined_call_operand.<no memory space> [shape: f32[1,1], index: 10, kind: input, shape index: {}]
  %s11 = inlined_call_operand.hbm [shape: f32[1,8], index: 11, kind: output, shape index: {0}]
  %s12 = inlined_call_operand.hbm [shape: f32[1,1], index: 12, kind: output, shape index: {1}]
  %13 = xla_tuple %s11, %s12
  %s14 = sld [smem:[#allocation0]]
  $region62: #{tpu_custom_call.1} parent=0
    _
  %s16 = ssub.s32 1, %s14
  %s17 = scalar_select 0, %s16, %s14
  %v18 = vstv %s6
  %19 = vst [vmem:[#allocation2] sm:$0x1] %v18
  %v20 = vstv %s10
  %21 = vst [vmem:[#allocation3] sm:$0x1] %v20
  $region1: #{tpu_custom_call.1} parent=0
    #allocation4 [shape = 'u8[512]{0}', space=vmem, size = 0x400, scoped, tag = 'output window, operand 0, single buffered']
    #allocation5 [shape = 's32[1]{0}', space=sflag, size = 0x4, scoped, tag = 'scoped memory for tpu_custom_call.1']
    #allocation6 [shape = 'u8[512]{0}', space=vmem, size = 0x400, scoped, tag = 'output window, operand 1, single buffered']
    #allocation7 [shape = 's32[1]{0}', space=sflag, size = 0x4, scoped, tag = 'scoped memory for tpu_custom_call.1']
    %22 = vsyncpa [#allocation5], 0
    %23 = vsyncpa [#allocation7], 0
    // Predicated region
    $region2: #{tpu_custom_call.1} parent=1 // pred_check
      _
    $region3: #{tpu_custom_call.1} parent=1 // pred_check_branch
      %25 = sbr.rel (0) target = $region5
    $region4: #{tpu_custom_call.1} parent=1 // pred_region
      _
    $region5: #{tpu_custom_call.1} parent=1 // pred_fallthru
      _
    // Predicated region
    $region6: #{tpu_custom_call.1} parent=1 // pred_check
      _
    $region7: #{tpu_custom_call.1} parent=1 // pred_check_branch
      %27 = sbr.rel (0) target = $region9
    $region8: #{tpu_custom_call.1} parent=1 // pred_region
      _
    $region9: #{tpu_custom_call.1} parent=1 // pred_fallthru
      _
    // Predicated region
    $region10: #{tpu_custom_call.1} parent=1 // pred_check
      _
    $region11: #{tpu_custom_call.1} parent=1 // pred_check_branch
      %29 = sbr.rel (0) target = $region13
    $region12: #{tpu_custom_call.1} parent=1 // pred_region
      _
    $region13: #{tpu_custom_call.1} parent=1 // pred_fallthru
      _
    // Predicated region
    $region14: #{tpu_custom_call.1} parent=1 // pred_check
      _
    $region15: #{tpu_custom_call.1} parent=1 // pred_check_branch
      %31 = sbr.rel (0) target = $region17
    $region16: #{tpu_custom_call.1} parent=1 // pred_region
      _
    $region17: #{tpu_custom_call.1} parent=1 // pred_fallthru
      _
    // Predicated region
    $region18: #{tpu_custom_call.1} parent=1 // pred_check
      _
    $region19: #{tpu_custom_call.1} parent=1 // pred_check_branch
      %33 = sbr.rel (0) target = $region21
    $region20: #{tpu_custom_call.1} parent=1 // pred_region
      _
    $region21: #{tpu_custom_call.1} parent=1 // pred_fallthru
      _
    // Predicated region
    $region22: #{tpu_custom_call.1} parent=1 // pred_check
      _
    $region23: #{tpu_custom_call.1} parent=1 // pred_check_branch
      %35 = sbr.rel (0) target = $region25
    $region24: #{tpu_custom_call.1} parent=1 // pred_region
      _
    $region25: #{tpu_custom_call.1} parent=1 // pred_fallthru
      _
    // Predicated region
    $region26: #{tpu_custom_call.1} parent=1 // pred_check
      _
    $region27: #{tpu_custom_call.1} parent=1 // pred_check_branch
      %37 = sbr.rel (0) target = $region29
    $region28: #{tpu_custom_call.1} parent=1 // pred_region
      _
    $region29: #{tpu_custom_call.1} parent=1 // pred_fallthru
      _
    // Predicated region
    $region30: #{tpu_custom_call.1} parent=1 // pred_check
      _
    $region31: #{tpu_custom_call.1} parent=1 // pred_check_branch
      %39 = sbr.rel (0) target = $region33
    $region32: #{tpu_custom_call.1} parent=1 // pred_region
      _
    $region33: #{tpu_custom_call.1} parent=1 // pred_fallthru
      _
    // Predicated region
    $region34: #{tpu_custom_call.1} parent=1 // pred_check
      _
    $region35: #{tpu_custom_call.1} parent=1 // pred_check_branch
      %41 = sbr.rel (0) target = $region37
    $region36: #{tpu_custom_call.1} parent=1 // pred_region
      _
    $region37: #{tpu_custom_call.1} parent=1 // pred_fallthru
      _
    // Predicated region
    $region38: #{tpu_custom_call.1} parent=1 // pred_check
      _
    $region39: #{tpu_custom_call.1} parent=1 // pred_check_branch
      %43 = sbr.rel (0) target = $region41
    $region40: #{tpu_custom_call.1} parent=1 // pred_region
      _
    $region41: #{tpu_custom_call.1} parent=1 // pred_fallthru
      _
    // Predicated region
    $region42: #{tpu_custom_call.1} parent=1 // pred_check
      _
    $region43: #{tpu_custom_call.1} parent=1 // pred_check_branch
      %45 = sbr.rel (0) target = $region45
    $region44: #{tpu_custom_call.1} parent=1 // pred_region
      _
    $region45: #{tpu_custom_call.1} parent=1 // pred_fallthru
      _
    %v46 = vld [vmem:[%s2] sm:$0xff]
    %v47 = vld [vmem:[%s2 + $0x8] sm:$0xff]
    %v48 = vld [vmem:[%s2 + $0x10] sm:$0xff]
    %v49 = vld [vmem:[%s2 + $0x18] sm:$0xff]
    %v50 = vld [vmem:[%s3] sm:$0xff]
    %v51 = vld [vmem:[%s3 + $0x8] sm:$0xff]
    %v52 = vld [vmem:[%s3 + $0x10] sm:$0xff]
    %v53 = vld [vmem:[%s3 + $0x18] sm:$0xff]
    %55 = vset.pattern.permute.xlu0 0
    %56 = vperm.xlu0 %55, %v46
    %v57 = vpop.permute.xlu0 %56
    %60 = vset.pattern.permute.xlu0 0
    %61 = vperm.xlu0 %60, %v47
    %v62 = vpop.permute.xlu0 %61
    %65 = vset.pattern.permute.xlu0 0
    %66 = vperm.xlu0 %65, %v48
    %v67 = vpop.permute.xlu0 %66
    %70 = vset.pattern.permute.xlu0 0
    %71 = vperm.xlu0 %70, %v49
    %v72 = vpop.permute.xlu0 %71
    %v74 = vmul.f32 %v57, %v50
    %v75 = vmul.f32 %v62, %v51
    %v76 = vmul.f32 %v67, %v52
    %v77 = vmul.f32 %v72, %v53
    %vm78 = vcmask 261120
    %v79 = vsel %vm78, %v74, 0.0
    %v80 = vsel %vm78, %v75, 0.0
    %v81 = vadd.f32 %v79, %v80
    %v82 = vsel %vm78, %v76, 0.0
    %v83 = vadd.f32 %v81, %v82
    %v84 = vsel %vm78, %v77, 0.0
    %v85 = vadd.f32 %v83, %v84
    %v86 = vrot.slane %v85, 4
    %v87 = vadd.f32 %v85, %v86
    %v88 = vrot.slane %v87, 2
    %v89 = vadd.f32 %v87, %v88
    %v90 = vrot.slane %v89, 1
    %v91 = vadd.f32 %v89, %v90
    %v92 = vld [vmem:[%s7] sm:$0xff]
    %v93 = vld [vmem:[%s7 + $0x8] sm:$0xff]
    %v94 = vld [vmem:[%s7 + $0x10] sm:$0xff]
    %v95 = vld [vmem:[%s7 + $0x18] sm:$0xff]
    %v96 = vmul.f32 %v57, %v92
    %v97 = vmul.f32 %v62, %v93
    %v98 = vmul.f32 %v67, %v94
    %v99 = vmul.f32 %v72, %v95
    %v100 = vsel %vm78, %v96, 0.0
    %v101 = vsel %vm78, %v97, 0.0
    %v102 = vadd.f32 %v100, %v101
    %v103 = vsel %vm78, %v98, 0.0
    %v104 = vadd.f32 %v102, %v103
    %v105 = vsel %vm78, %v99, 0.0
    %v106 = vadd.f32 %v104, %v105
    %v107 = vrot.slane %v106, 4
    %v108 = vadd.f32 %v106, %v107
    %v109 = vrot.slane %v108, 2
    %v110 = vadd.f32 %v108, %v109
    %v111 = vrot.slane %v110, 1
    %v112 = vadd.f32 %v110, %v111
    %v113 = vld [vmem:[%s8] sm:$0x1]
    %v114 = vadd.f32 %v112, %v113
    %v115 = vmax.f32 %v114, 0.0
    %v116 = vld [vmem:[%s9] sm:$0x1]
    %v117 = vmul.f32 %v115, %v116
    %vm118 = vcmask 253952
    %v119 = vsel %vm118, %v117, 0.0
    %120 = vadd.xlane.f32.xlu0 %v119
    %v121 = vpop.xlane.xlu0 %120
    %v122 = vld [vmem:[#allocation3] sm:$0x1]
    %v123 = vadd.f32 %v121, %v122
    %vm124 = vcmask 0
    %125 = vst.msk [vmem:[#allocation6] sm:$0x1] %vm124, %v123
    %v126 = vld [vmem:[%s0] sm:$0xff]
    %v127 = vlaneseq
    %v128 = vand.u32 %v127, 127
    %v129 = vadd.s32 %v128, 128
    %v130 = vadd.s32 %v128, 256
    %v131 = vadd.s32 %v128, 384
    %v132 = vadd.s32 %v128, 512
    %v133 = vadd.s32 %v128, 640
    %v134 = vadd.s32 %v128, 768
    %v135 = vadd.s32 %v128, 896
    %136 = vset.pattern.permute.xlu0 0
    %137 = vperm.xlu0 %136, %v126
    %v138 = vpop.permute.xlu0 %137
    %vm139 = vcmp.eq.s32.totalorder %v128, %v138
    %vm140 = vcmp.eq.s32.totalorder %v129, %v138
    %vm141 = vcmp.eq.s32.totalorder %v130, %v138
    %vm142 = vcmp.eq.s32.totalorder %v131, %v138
    %vm143 = vcmp.eq.s32.totalorder %v132, %v138
    %vm144 = vcmp.eq.s32.totalorder %v133, %v138
    %vm145 = vcmp.eq.s32.totalorder %v134, %v138
    %vm146 = vcmp.eq.s32.totalorder %v135, %v138
    %v147 = vsel %vm139, 1, 0
    %v148 = vsel %vm140, 1, 0
    %v149 = vsel %vm141, 1, 0
    %v150 = vsel %vm142, 1, 0
    %v151 = vsel %vm143, 1, 0
    %v152 = vsel %vm144, 1, 0
    %v153 = vsel %vm145, 1, 0
    %v154 = vsel %vm146, 1, 0
    %v155 = vcvt.s32.f32 %v147
    %v156 = vcvt.s32.f32 %v148
    %v157 = vcvt.s32.f32 %v149
    %v158 = vcvt.s32.f32 %v150
    %v159 = vcvt.s32.f32 %v151
    %v160 = vcvt.s32.f32 %v152
    %v161 = vcvt.s32.f32 %v153
    %v162 = vcvt.s32.f32 %v154
    %v163 = vadd.f32 %v155, 0.0
    %v164 = vadd.f32 %v156, 0.0
    %v165 = vadd.f32 %v157, 0.0
    %v166 = vadd.f32 %v158, 0.0
    %v167 = vadd.f32 %v159, 0.0
    %v168 = vadd.f32 %v160, 0.0
    %v169 = vadd.f32 %v161, 0.0
    %v170 = vadd.f32 %v162, 0.0
    %171 = vset.pattern.permute.xlu0 1
    %172 = vperm.xlu0 %171, %v126
    %v173 = vpop.permute.xlu0 %172
    %vm174 = vcmp.eq.s32.totalorder %v128, %v173
    %vm175 = vcmp.eq.s32.totalorder %v129, %v173
    %vm176 = vcmp.eq.s32.totalorder %v130, %v173
    %vm177 = vcmp.eq.s32.totalorder %v131, %v173
    %vm178 = vcmp.eq.s32.totalorder %v132, %v173
    %vm179 = vcmp.eq.s32.totalorder %v133, %v173
    %vm180 = vcmp.eq.s32.totalorder %v134, %v173
    %vm181 = vcmp.eq.s32.totalorder %v135, %v173
    %v182 = vsel %vm174, 1, 0
    %v183 = vsel %vm175, 1, 0
    %v184 = vsel %vm176, 1, 0
    %v185 = vsel %vm177, 1, 0
    %v186 = vsel %vm178, 1, 0
    %v187 = vsel %vm179, 1, 0
    %v188 = vsel %vm180, 1, 0
    %v189 = vsel %vm181, 1, 0
    %v190 = vcvt.s32.f32 %v182
    %v191 = vcvt.s32.f32 %v183
    %v192 = vcvt.s32.f32 %v184
    %v193 = vcvt.s32.f32 %v185
    %v194 = vcvt.s32.f32 %v186
    %v195 = vcvt.s32.f32 %v187
    %v196 = vcvt.s32.f32 %v188
    %v197 = vcvt.s32.f32 %v189
    %v198 = vadd.f32 %v163, %v190
    %v199 = vadd.f32 %v164, %v191
    %v200 = vadd.f32 %v165, %v192
    %v201 = vadd.f32 %v166, %v193
    %v202 = vadd.f32 %v167, %v194
    %v203 = vadd.f32 %v168, %v195
    %v204 = vadd.f32 %v169, %v196
    %v205 = vadd.f32 %v170, %v197
    %206 = vset.pattern.permute.xlu0 2
    %207 = vperm.xlu0 %206, %v126
    %v208 = vpop.permute.xlu0 %207
    %vm209 = vcmp.eq.s32.totalorder %v128, %v208
    %vm210 = vcmp.eq.s32.totalorder %v129, %v208
    %vm211 = vcmp.eq.s32.totalorder %v130, %v208
    %vm212 = vcmp.eq.s32.totalorder %v131, %v208
    %vm213 = vcmp.eq.s32.totalorder %v132, %v208
    %vm214 = vcmp.eq.s32.totalorder %v133, %v208
    %vm215 = vcmp.eq.s32.totalorder %v134, %v208
    %vm216 = vcmp.eq.s32.totalorder %v135, %v208
    %v217 = vsel %vm209, 1, 0
    %v218 = vsel %vm210, 1, 0
    %v219 = vsel %vm211, 1, 0
    %v220 = vsel %vm212, 1, 0
    %v221 = vsel %vm213, 1, 0
    %v222 = vsel %vm214, 1, 0
    %v223 = vsel %vm215, 1, 0
    %v224 = vsel %vm216, 1, 0
    %v225 = vcvt.s32.f32 %v217
    %v226 = vcvt.s32.f32 %v218
    %v227 = vcvt.s32.f32 %v219
    %v228 = vcvt.s32.f32 %v220
    %v229 = vcvt.s32.f32 %v221
    %v230 = vcvt.s32.f32 %v222
    %v231 = vcvt.s32.f32 %v223
    %v232 = vcvt.s32.f32 %v224
    %v233 = vadd.f32 %v198, %v225
    %v234 = vadd.f32 %v199, %v226
    %v235 = vadd.f32 %v200, %v227
    %v236 = vadd.f32 %v201, %v228
    %v237 = vadd.f32 %v202, %v229
    %v238 = vadd.f32 %v203, %v230
    %v239 = vadd.f32 %v204, %v231
    %v240 = vadd.f32 %v205, %v232
    %241 = vset.pattern.permute.xlu0 3
    %242 = vperm.xlu0 %241, %v126
    %v243 = vpop.permute.xlu0 %242
    %vm244 = vcmp.eq.s32.totalorder %v128, %v243
    %vm245 = vcmp.eq.s32.totalorder %v129, %v243
    %vm246 = vcmp.eq.s32.totalorder %v130, %v243
    %vm247 = vcmp.eq.s32.totalorder %v131, %v243
    %vm248 = vcmp.eq.s32.totalorder %v132, %v243
    %vm249 = vcmp.eq.s32.totalorder %v133, %v243
    %vm250 = vcmp.eq.s32.totalorder %v134, %v243
    %vm251 = vcmp.eq.s32.totalorder %v135, %v243
    %v252 = vsel %vm244, 1, 0
    %v253 = vsel %vm245, 1, 0
    %v254 = vsel %vm246, 1, 0
    %v255 = vsel %vm247, 1, 0
    %v256 = vsel %vm248, 1, 0
    %v257 = vsel %vm249, 1, 0
    %v258 = vsel %vm250, 1, 0
    %v259 = vsel %vm251, 1, 0
    %v260 = vcvt.s32.f32 %v252
    %v261 = vcvt.s32.f32 %v253
    %v262 = vcvt.s32.f32 %v254
    %v263 = vcvt.s32.f32 %v255
    %v264 = vcvt.s32.f32 %v256
    %v265 = vcvt.s32.f32 %v257
    %v266 = vcvt.s32.f32 %v258
    %v267 = vcvt.s32.f32 %v259
    %v268 = vadd.f32 %v233, %v260
    %v269 = vadd.f32 %v234, %v261
    %v270 = vadd.f32 %v235, %v262
    %v271 = vadd.f32 %v236, %v263
    %v272 = vadd.f32 %v237, %v264
    %v273 = vadd.f32 %v238, %v265
    %v274 = vadd.f32 %v239, %v266
    %v275 = vadd.f32 %v240, %v267
    %276 = vset.pattern.permute.xlu0 4
    %277 = vperm.xlu0 %276, %v126
    %v278 = vpop.permute.xlu0 %277
    %vm279 = vcmp.eq.s32.totalorder %v128, %v278
    %vm280 = vcmp.eq.s32.totalorder %v129, %v278
    %vm281 = vcmp.eq.s32.totalorder %v130, %v278
    %vm282 = vcmp.eq.s32.totalorder %v131, %v278
    %vm283 = vcmp.eq.s32.totalorder %v132, %v278
    %vm284 = vcmp.eq.s32.totalorder %v133, %v278
    %vm285 = vcmp.eq.s32.totalorder %v134, %v278
    %vm286 = vcmp.eq.s32.totalorder %v135, %v278
    %v287 = vsel %vm279, 1, 0
    %v288 = vsel %vm280, 1, 0
    %v289 = vsel %vm281, 1, 0
    %v290 = vsel %vm282, 1, 0
    %v291 = vsel %vm283, 1, 0
    %v292 = vsel %vm284, 1, 0
    %v293 = vsel %vm285, 1, 0
    %v294 = vsel %vm286, 1, 0
    %v295 = vcvt.s32.f32 %v287
    %v296 = vcvt.s32.f32 %v288
    %v297 = vcvt.s32.f32 %v289
    %v298 = vcvt.s32.f32 %v290
    %v299 = vcvt.s32.f32 %v291
    %v300 = vcvt.s32.f32 %v292
    %v301 = vcvt.s32.f32 %v293
    %v302 = vcvt.s32.f32 %v294
    %v303 = vadd.f32 %v268, %v295
    %v304 = vadd.f32 %v269, %v296
    %v305 = vadd.f32 %v270, %v297
    %v306 = vadd.f32 %v271, %v298
    %v307 = vadd.f32 %v272, %v299
    %v308 = vadd.f32 %v273, %v300
    %v309 = vadd.f32 %v274, %v301
    %v310 = vadd.f32 %v275, %v302
    %311 = vset.pattern.permute.xlu0 5
    %312 = vperm.xlu0 %311, %v126
    %v313 = vpop.permute.xlu0 %312
    %vm314 = vcmp.eq.s32.totalorder %v128, %v313
    %vm315 = vcmp.eq.s32.totalorder %v129, %v313
    %vm316 = vcmp.eq.s32.totalorder %v130, %v313
    %vm317 = vcmp.eq.s32.totalorder %v131, %v313
    %vm318 = vcmp.eq.s32.totalorder %v132, %v313
    %vm319 = vcmp.eq.s32.totalorder %v133, %v313
    %vm320 = vcmp.eq.s32.totalorder %v134, %v313
    %vm321 = vcmp.eq.s32.totalorder %v135, %v313
    %v322 = vsel %vm314, 1, 0
    %v323 = vsel %vm315, 1, 0
    %v324 = vsel %vm316, 1, 0
    %v325 = vsel %vm317, 1, 0
    %v326 = vsel %vm318, 1, 0
    %v327 = vsel %vm319, 1, 0
    %v328 = vsel %vm320, 1, 0
    %v329 = vsel %vm321, 1, 0
    %v330 = vcvt.s32.f32 %v322
    %v331 = vcvt.s32.f32 %v323
    %v332 = vcvt.s32.f32 %v324
    %v333 = vcvt.s32.f32 %v325
    %v334 = vcvt.s32.f32 %v326
    %v335 = vcvt.s32.f32 %v327
    %v336 = vcvt.s32.f32 %v328
    %v337 = vcvt.s32.f32 %v329
    %v338 = vadd.f32 %v303, %v330
    %v339 = vadd.f32 %v304, %v331
    %v340 = vadd.f32 %v305, %v332
    %v341 = vadd.f32 %v306, %v333
    %v342 = vadd.f32 %v307, %v334
    %v343 = vadd.f32 %v308, %v335
    %v344 = vadd.f32 %v309, %v336
    %v345 = vadd.f32 %v310, %v337
    %346 = vset.pattern.permute.xlu0 6
    %347 = vperm.xlu0 %346, %v126
    %v348 = vpop.permute.xlu0 %347
    %vm349 = vcmp.eq.s32.totalorder %v128, %v348
    %vm350 = vcmp.eq.s32.totalorder %v129, %v348
    %vm351 = vcmp.eq.s32.totalorder %v130, %v348
    %vm352 = vcmp.eq.s32.totalorder %v131, %v348
    %vm353 = vcmp.eq.s32.totalorder %v132, %v348
    %vm354 = vcmp.eq.s32.totalorder %v133, %v348
    %vm355 = vcmp.eq.s32.totalorder %v134, %v348
    %vm356 = vcmp.eq.s32.totalorder %v135, %v348
    %v357 = vsel %vm349, 1, 0
    %v358 = vsel %vm350, 1, 0
    %v359 = vsel %vm351, 1, 0
    %v360 = vsel %vm352, 1, 0
    %v361 = vsel %vm353, 1, 0
    %v362 = vsel %vm354, 1, 0
    %v363 = vsel %vm355, 1, 0
    %v364 = vsel %vm356, 1, 0
    %v365 = vcvt.s32.f32 %v357
    %v366 = vcvt.s32.f32 %v358
    %v367 = vcvt.s32.f32 %v359
    %v368 = vcvt.s32.f32 %v360
    %v369 = vcvt.s32.f32 %v361
    %v370 = vcvt.s32.f32 %v362
    %v371 = vcvt.s32.f32 %v363
    %v372 = vcvt.s32.f32 %v364
    %v373 = vadd.f32 %v338, %v365
    %v374 = vadd.f32 %v339, %v366
    %v375 = vadd.f32 %v340, %v367
    %v376 = vadd.f32 %v341, %v368
    %v377 = vadd.f32 %v342, %v369
    %v378 = vadd.f32 %v343, %v370
    %v379 = vadd.f32 %v344, %v371
    %v380 = vadd.f32 %v345, %v372
    %381 = vset.pattern.permute.xlu0 7
    %382 = vperm.xlu0 %381, %v126
    %v383 = vpop.permute.xlu0 %382
    %vm384 = vcmp.eq.s32.totalorder %v128, %v383
    %vm385 = vcmp.eq.s32.totalorder %v129, %v383
    %vm386 = vcmp.eq.s32.totalorder %v130, %v383
    %vm387 = vcmp.eq.s32.totalorder %v131, %v383
    %vm388 = vcmp.eq.s32.totalorder %v132, %v383
    %vm389 = vcmp.eq.s32.totalorder %v133, %v383
    %vm390 = vcmp.eq.s32.totalorder %v134, %v383
    %vm391 = vcmp.eq.s32.totalorder %v135, %v383
    %v392 = vsel %vm384, 1, 0
    %v393 = vsel %vm385, 1, 0
    %v394 = vsel %vm386, 1, 0
    %v395 = vsel %vm387, 1, 0
    %v396 = vsel %vm388, 1, 0
    %v397 = vsel %vm389, 1, 0
    %v398 = vsel %vm390, 1, 0
    %v399 = vsel %vm391, 1, 0
    %v400 = vcvt.s32.f32 %v392
    %v401 = vcvt.s32.f32 %v393
    %v402 = vcvt.s32.f32 %v394
    %v403 = vcvt.s32.f32 %v395
    %v404 = vcvt.s32.f32 %v396
    %v405 = vcvt.s32.f32 %v397
    %v406 = vcvt.s32.f32 %v398
    %v407 = vcvt.s32.f32 %v399
    %v408 = vadd.f32 %v373, %v400
    %v409 = vadd.f32 %v374, %v401
    %v410 = vadd.f32 %v375, %v402
    %v411 = vadd.f32 %v376, %v403
    %v412 = vadd.f32 %v377, %v404
    %v413 = vadd.f32 %v378, %v405
    %v414 = vadd.f32 %v379, %v406
    %v415 = vadd.f32 %v380, %v407
    %416 = vset.pattern.permute.xlu0 8
    %417 = vperm.xlu0 %416, %v126
    %v418 = vpop.permute.xlu0 %417
    %vm419 = vcmp.eq.s32.totalorder %v128, %v418
    %vm420 = vcmp.eq.s32.totalorder %v129, %v418
    %vm421 = vcmp.eq.s32.totalorder %v130, %v418
    %vm422 = vcmp.eq.s32.totalorder %v131, %v418
    %vm423 = vcmp.eq.s32.totalorder %v132, %v418
    %vm424 = vcmp.eq.s32.totalorder %v133, %v418
    %vm425 = vcmp.eq.s32.totalorder %v134, %v418
    %vm426 = vcmp.eq.s32.totalorder %v135, %v418
    %v427 = vsel %vm419, 1, 0
    %v428 = vsel %vm420, 1, 0
    %v429 = vsel %vm421, 1, 0
    %v430 = vsel %vm422, 1, 0
    %v431 = vsel %vm423, 1, 0
    %v432 = vsel %vm424, 1, 0
    %v433 = vsel %vm425, 1, 0
    %v434 = vsel %vm426, 1, 0
    %v435 = vcvt.s32.f32 %v427
    %v436 = vcvt.s32.f32 %v428
    %v437 = vcvt.s32.f32 %v429
    %v438 = vcvt.s32.f32 %v430
    %v439 = vcvt.s32.f32 %v431
    %v440 = vcvt.s32.f32 %v432
    %v441 = vcvt.s32.f32 %v433
    %v442 = vcvt.s32.f32 %v434
    %v443 = vadd.f32 %v408, %v435
    %v444 = vadd.f32 %v409, %v436
    %v445 = vadd.f32 %v410, %v437
    %v446 = vadd.f32 %v411, %v438
    %v447 = vadd.f32 %v412, %v439
    %v448 = vadd.f32 %v413, %v440
    %v449 = vadd.f32 %v414, %v441
    %v450 = vadd.f32 %v415, %v442
    %451 = vset.pattern.permute.xlu0 9
    %452 = vperm.xlu0 %451, %v126
    %v453 = vpop.permute.xlu0 %452
    %vm454 = vcmp.eq.s32.totalorder %v128, %v453
    %vm455 = vcmp.eq.s32.totalorder %v129, %v453
    %vm456 = vcmp.eq.s32.totalorder %v130, %v453
    %vm457 = vcmp.eq.s32.totalorder %v131, %v453
    %vm458 = vcmp.eq.s32.totalorder %v132, %v453
    %vm459 = vcmp.eq.s32.totalorder %v133, %v453
    %vm460 = vcmp.eq.s32.totalorder %v134, %v453
    %vm461 = vcmp.eq.s32.totalorder %v135, %v453
    %v462 = vsel %vm454, 1, 0
    %v463 = vsel %vm455, 1, 0
    %v464 = vsel %vm456, 1, 0
    %v465 = vsel %vm457, 1, 0
    %v466 = vsel %vm458, 1, 0
    %v467 = vsel %vm459, 1, 0
    %v468 = vsel %vm460, 1, 0
    %v469 = vsel %vm461, 1, 0
    %v470 = vcvt.s32.f32 %v462
    %v471 = vcvt.s32.f32 %v463
    %v472 = vcvt.s32.f32 %v464
    %v473 = vcvt.s32.f32 %v465
    %v474 = vcvt.s32.f32 %v466
    %v475 = vcvt.s32.f32 %v467
    %v476 = vcvt.s32.f32 %v468
    %v477 = vcvt.s32.f32 %v469
    %v478 = vadd.f32 %v443, %v470
    %v479 = vadd.f32 %v444, %v471
    %v480 = vadd.f32 %v445, %v472
    %v481 = vadd.f32 %v446, %v473
    %v482 = vadd.f32 %v447, %v474
    %v483 = vadd.f32 %v448, %v475
    %v484 = vadd.f32 %v449, %v476
    %v485 = vadd.f32 %v450, %v477
    %486 = vset.pattern.permute.xlu0 10
    %487 = vperm.xlu0 %486, %v126
    %v488 = vpop.permute.xlu0 %487
    %vm489 = vcmp.eq.s32.totalorder %v128, %v488
    %vm490 = vcmp.eq.s32.totalorder %v129, %v488
    %vm491 = vcmp.eq.s32.totalorder %v130, %v488
    %vm492 = vcmp.eq.s32.totalorder %v131, %v488
    %vm493 = vcmp.eq.s32.totalorder %v132, %v488
    %vm494 = vcmp.eq.s32.totalorder %v133, %v488
    %vm495 = vcmp.eq.s32.totalorder %v134, %v488
    %vm496 = vcmp.eq.s32.totalorder %v135, %v488
    %v497 = vsel %vm489, 1, 0
    %v498 = vsel %vm490, 1, 0
    %v499 = vsel %vm491, 1, 0
    %v500 = vsel %vm492, 1, 0
    %v501 = vsel %vm493, 1, 0
    %v502 = vsel %vm494, 1, 0
    %v503 = vsel %vm495, 1, 0
    %v504 = vsel %vm496, 1, 0
    %v505 = vcvt.s32.f32 %v497
    %v506 = vcvt.s32.f32 %v498
    %v507 = vcvt.s32.f32 %v499
    %v508 = vcvt.s32.f32 %v500
    %v509 = vcvt.s32.f32 %v501
    %v510 = vcvt.s32.f32 %v502
    %v511 = vcvt.s32.f32 %v503
    %v512 = vcvt.s32.f32 %v504
    %v513 = vadd.f32 %v478, %v505
    %v514 = vadd.f32 %v479, %v506
    %v515 = vadd.f32 %v480, %v507
    %v516 = vadd.f32 %v481, %v508
    %v517 = vadd.f32 %v482, %v509
    %v518 = vadd.f32 %v483, %v510
    %v519 = vadd.f32 %v484, %v511
    %v520 = vadd.f32 %v485, %v512
    %521 = vset.pattern.permute.xlu0 11
    %522 = vperm.xlu0 %521, %v126
    %v523 = vpop.permute.xlu0 %522
    %vm524 = vcmp.eq.s32.totalorder %v128, %v523
    %vm525 = vcmp.eq.s32.totalorder %v129, %v523
    %vm526 = vcmp.eq.s32.totalorder %v130, %v523
    %vm527 = vcmp.eq.s32.totalorder %v131, %v523
    %vm528 = vcmp.eq.s32.totalorder %v132, %v523
    %vm529 = vcmp.eq.s32.totalorder %v133, %v523
    %vm530 = vcmp.eq.s32.totalorder %v134, %v523
    %vm531 = vcmp.eq.s32.totalorder %v135, %v523
    %v532 = vsel %vm524, 1, 0
    %v533 = vsel %vm525, 1, 0
    %v534 = vsel %vm526, 1, 0
    %v535 = vsel %vm527, 1, 0
    %v536 = vsel %vm528, 1, 0
    %v537 = vsel %vm529, 1, 0
    %v538 = vsel %vm530, 1, 0
    %v539 = vsel %vm531, 1, 0
    %v540 = vcvt.s32.f32 %v532
    %v541 = vcvt.s32.f32 %v533
    %v542 = vcvt.s32.f32 %v534
    %v543 = vcvt.s32.f32 %v535
    %v544 = vcvt.s32.f32 %v536
    %v545 = vcvt.s32.f32 %v537
    %v546 = vcvt.s32.f32 %v538
    %v547 = vcvt.s32.f32 %v539
    %v548 = vadd.f32 %v513, %v540
    %v549 = vadd.f32 %v514, %v541
    %v550 = vadd.f32 %v515, %v542
    %v551 = vadd.f32 %v516, %v543
    %v552 = vadd.f32 %v517, %v544
    %v553 = vadd.f32 %v518, %v545
    %v554 = vadd.f32 %v519, %v546
    %v555 = vadd.f32 %v520, %v547
    %556 = vset.pattern.permute.xlu0 12
    %557 = vperm.xlu0 %556, %v126
    %v558 = vpop.permute.xlu0 %557
    %vm559 = vcmp.eq.s32.totalorder %v128, %v558
    %vm560 = vcmp.eq.s32.totalorder %v129, %v558
    %vm561 = vcmp.eq.s32.totalorder %v130, %v558
    %vm562 = vcmp.eq.s32.totalorder %v131, %v558
    %vm563 = vcmp.eq.s32.totalorder %v132, %v558
    %vm564 = vcmp.eq.s32.totalorder %v133, %v558
    %vm565 = vcmp.eq.s32.totalorder %v134, %v558
    %vm566 = vcmp.eq.s32.totalorder %v135, %v558
    %v567 = vsel %vm559, 1, 0
    %v568 = vsel %vm560, 1, 0
    %v569 = vsel %vm561, 1, 0
    %v570 = vsel %vm562, 1, 0
    %v571 = vsel %vm563, 1, 0
    %v572 = vsel %vm564, 1, 0
    %v573 = vsel %vm565, 1, 0
    %v574 = vsel %vm566, 1, 0
    %v575 = vcvt.s32.f32 %v567
    %v576 = vcvt.s32.f32 %v568
    %v577 = vcvt.s32.f32 %v569
    %v578 = vcvt.s32.f32 %v570
    %v579 = vcvt.s32.f32 %v571
    %v580 = vcvt.s32.f32 %v572
    %v581 = vcvt.s32.f32 %v573
    %v582 = vcvt.s32.f32 %v574
    %v583 = vadd.f32 %v548, %v575
    %v584 = vadd.f32 %v549, %v576
    %v585 = vadd.f32 %v550, %v577
    %v586 = vadd.f32 %v551, %v578
    %v587 = vadd.f32 %v552, %v579
    %v588 = vadd.f32 %v553, %v580
    %v589 = vadd.f32 %v554, %v581
    %v590 = vadd.f32 %v555, %v582
    %591 = vset.pattern.permute.xlu0 13
    %592 = vperm.xlu0 %591, %v126
    %v593 = vpop.permute.xlu0 %592
    %vm594 = vcmp.eq.s32.totalorder %v128, %v593
    %vm595 = vcmp.eq.s32.totalorder %v129, %v593
    %vm596 = vcmp.eq.s32.totalorder %v130, %v593
    %vm597 = vcmp.eq.s32.totalorder %v131, %v593
    %vm598 = vcmp.eq.s32.totalorder %v132, %v593
    %vm599 = vcmp.eq.s32.totalorder %v133, %v593
    %vm600 = vcmp.eq.s32.totalorder %v134, %v593
    %vm601 = vcmp.eq.s32.totalorder %v135, %v593
    %v602 = vsel %vm594, 1, 0
    %v603 = vsel %vm595, 1, 0
    %v604 = vsel %vm596, 1, 0
    %v605 = vsel %vm597, 1, 0
    %v606 = vsel %vm598, 1, 0
    %v607 = vsel %vm599, 1, 0
    %v608 = vsel %vm600, 1, 0
    %v609 = vsel %vm601, 1, 0
    %v610 = vcvt.s32.f32 %v602
    %v611 = vcvt.s32.f32 %v603
    %v612 = vcvt.s32.f32 %v604
    %v613 = vcvt.s32.f32 %v605
    %v614 = vcvt.s32.f32 %v606
    %v615 = vcvt.s32.f32 %v607
    %v616 = vcvt.s32.f32 %v608
    %v617 = vcvt.s32.f32 %v609
    %v618 = vadd.f32 %v583, %v610
    %v619 = vadd.f32 %v584, %v611
    %v620 = vadd.f32 %v585, %v612
    %v621 = vadd.f32 %v586, %v613
    %v622 = vadd.f32 %v587, %v614
    %v623 = vadd.f32 %v588, %v615
    %v624 = vadd.f32 %v589, %v616
    %v625 = vadd.f32 %v590, %v617
    %626 = vset.pattern.permute.xlu0 14
    %627 = vperm.xlu0 %626, %v126
    %v628 = vpop.permute.xlu0 %627
    %vm629 = vcmp.eq.s32.totalorder %v128, %v628
    %vm630 = vcmp.eq.s32.totalorder %v129, %v628
    %vm631 = vcmp.eq.s32.totalorder %v130, %v628
    %vm632 = vcmp.eq.s32.totalorder %v131, %v628
    %vm633 = vcmp.eq.s32.totalorder %v132, %v628
    %vm634 = vcmp.eq.s32.totalorder %v133, %v628
    %vm635 = vcmp.eq.s32.totalorder %v134, %v628
    %vm636 = vcmp.eq.s32.totalorder %v135, %v628
    %v637 = vsel %vm629, 1, 0
    %v638 = vsel %vm630, 1, 0
    %v639 = vsel %vm631, 1, 0
    %v640 = vsel %vm632, 1, 0
    %v641 = vsel %vm633, 1, 0
    %v642 = vsel %vm634, 1, 0
    %v643 = vsel %vm635, 1, 0
    %v644 = vsel %vm636, 1, 0
    %v645 = vcvt.s32.f32 %v637
    %v646 = vcvt.s32.f32 %v638
    %v647 = vcvt.s32.f32 %v639
    %v648 = vcvt.s32.f32 %v640
    %v649 = vcvt.s32.f32 %v641
    %v650 = vcvt.s32.f32 %v642
    %v651 = vcvt.s32.f32 %v643
    %v652 = vcvt.s32.f32 %v644
    %v653 = vadd.f32 %v618, %v645
    %v654 = vadd.f32 %v619, %v646
    %v655 = vadd.f32 %v620, %v647
    %v656 = vadd.f32 %v621, %v648
    %v657 = vadd.f32 %v622, %v649
    %v658 = vadd.f32 %v623, %v650
    %v659 = vadd.f32 %v624, %v651
    %v660 = vadd.f32 %v625, %v652
    %661 = vset.pattern.permute.xlu0 15
    %662 = vperm.xlu0 %661, %v126
    %v663 = vpop.permute.xlu0 %662
    %vm664 = vcmp.eq.s32.totalorder %v128, %v663
    %vm665 = vcmp.eq.s32.totalorder %v129, %v663
    %vm666 = vcmp.eq.s32.totalorder %v130, %v663
    %vm667 = vcmp.eq.s32.totalorder %v131, %v663
    %vm668 = vcmp.eq.s32.totalorder %v132, %v663
    %vm669 = vcmp.eq.s32.totalorder %v133, %v663
    %vm670 = vcmp.eq.s32.totalorder %v134, %v663
    %vm671 = vcmp.eq.s32.totalorder %v135, %v663
    %v672 = vsel %vm664, 1, 0
    %v673 = vsel %vm665, 1, 0
    %v674 = vsel %vm666, 1, 0
    %v675 = vsel %vm667, 1, 0
    %v676 = vsel %vm668, 1, 0
    %v677 = vsel %vm669, 1, 0
    %v678 = vsel %vm670, 1, 0
    %v679 = vsel %vm671, 1, 0
    %v680 = vcvt.s32.f32 %v672
    %v681 = vcvt.s32.f32 %v673
    %v682 = vcvt.s32.f32 %v674
    %v683 = vcvt.s32.f32 %v675
    %v684 = vcvt.s32.f32 %v676
    %v685 = vcvt.s32.f32 %v677
    %v686 = vcvt.s32.f32 %v678
    %v687 = vcvt.s32.f32 %v679
    %v688 = vadd.f32 %v653, %v680
    %v689 = vadd.f32 %v654, %v681
    %v690 = vadd.f32 %v655, %v682
    %v691 = vadd.f32 %v656, %v683
    %v692 = vadd.f32 %v657, %v684
    %v693 = vadd.f32 %v658, %v685
    %v694 = vadd.f32 %v659, %v686
    %v695 = vadd.f32 %v660, %v687
    %v696 = vld [vmem:[%s1] sm:$0xff]
    %v697 = vld [vmem:[%s1 + $0x8] sm:$0xff]
    %v698 = vld [vmem:[%s1 + $0x10] sm:$0xff]
    %v699 = vld [vmem:[%s1 + $0x18] sm:$0xff]
    %v700 = vld [vmem:[%s1 + $0x20] sm:$0xff]
    %v701 = vld [vmem:[%s1 + $0x28] sm:$0xff]
    %v702 = vld [vmem:[%s1 + $0x30] sm:$0xff]
    %v703 = vld [vmem:[%s1 + $0x38] sm:$0xff]
    %v704 = vld [vmem:[%s1 + $0x40] sm:$0xff]
    %v705 = vld [vmem:[%s1 + $0x48] sm:$0xff]
    %v706 = vld [vmem:[%s1 + $0x50] sm:$0xff]
    %v707 = vld [vmem:[%s1 + $0x58] sm:$0xff]
    %v708 = vld [vmem:[%s1 + $0x60] sm:$0xff]
    %v709 = vld [vmem:[%s1 + $0x68] sm:$0xff]
    %v710 = vld [vmem:[%s1 + $0x70] sm:$0xff]
    %v711 = vld [vmem:[%s1 + $0x78] sm:$0xff]
    %v712 = vld [vmem:[%s1 + $0x80] sm:$0xff]
    %v713 = vld [vmem:[%s1 + $0x88] sm:$0xff]
    %v714 = vld [vmem:[%s1 + $0x90] sm:$0xff]
    %v715 = vld [vmem:[%s1 + $0x98] sm:$0xff]
    %v716 = vld [vmem:[%s1 + $0xa0] sm:$0xff]
    %v717 = vld [vmem:[%s1 + $0xa8] sm:$0xff]
    %v718 = vld [vmem:[%s1 + $0xb0] sm:$0xff]
    %v719 = vld [vmem:[%s1 + $0xb8] sm:$0xff]
    %v720 = vld [vmem:[%s1 + $0xc0] sm:$0xff]
    %v721 = vld [vmem:[%s1 + $0xc8] sm:$0xff]
    %v722 = vld [vmem:[%s1 + $0xd0] sm:$0xff]
    %v723 = vld [vmem:[%s1 + $0xd8] sm:$0xff]
    %v724 = vld [vmem:[%s1 + $0xe0] sm:$0xff]
    %v725 = vld [vmem:[%s1 + $0xe8] sm:$0xff]
    %v726 = vld [vmem:[%s1 + $0xf0] sm:$0xff]
    %v727 = vld [vmem:[%s1 + $0xf8] sm:$0xff]
    %v728 = vld [vmem:[%s1 + $0x100] sm:$0xff]
    %v729 = vld [vmem:[%s1 + $0x108] sm:$0xff]
    %v730 = vld [vmem:[%s1 + $0x110] sm:$0xff]
    %v731 = vld [vmem:[%s1 + $0x118] sm:$0xff]
    %v732 = vld [vmem:[%s1 + $0x120] sm:$0xff]
    %v733 = vld [vmem:[%s1 + $0x128] sm:$0xff]
    %v734 = vld [vmem:[%s1 + $0x130] sm:$0xff]
    %v735 = vld [vmem:[%s1 + $0x138] sm:$0xff]
    %v736 = vld [vmem:[%s1 + $0x140] sm:$0xff]
    %v737 = vld [vmem:[%s1 + $0x148] sm:$0xff]
    %v738 = vld [vmem:[%s1 + $0x150] sm:$0xff]
    %v739 = vld [vmem:[%s1 + $0x158] sm:$0xff]
    %v740 = vld [vmem:[%s1 + $0x160] sm:$0xff]
    %v741 = vld [vmem:[%s1 + $0x168] sm:$0xff]
    %v742 = vld [vmem:[%s1 + $0x170] sm:$0xff]
    %v743 = vld [vmem:[%s1 + $0x178] sm:$0xff]
    %v744 = vld [vmem:[%s1 + $0x180] sm:$0xff]
    %v745 = vld [vmem:[%s1 + $0x188] sm:$0xff]
    %v746 = vld [vmem:[%s1 + $0x190] sm:$0xff]
    %v747 = vld [vmem:[%s1 + $0x198] sm:$0xff]
    %v748 = vld [vmem:[%s1 + $0x1a0] sm:$0xff]
    %v749 = vld [vmem:[%s1 + $0x1a8] sm:$0xff]
    %v750 = vld [vmem:[%s1 + $0x1b0] sm:$0xff]
    %v751 = vld [vmem:[%s1 + $0x1b8] sm:$0xff]
    %v752 = vld [vmem:[%s1 + $0x1c0] sm:$0xff]
    %v753 = vld [vmem:[%s1 + $0x1c8] sm:$0xff]
    %v754 = vld [vmem:[%s1 + $0x1d0] sm:$0xff]
    %v755 = vld [vmem:[%s1 + $0x1d8] sm:$0xff]
    %v756 = vld [vmem:[%s1 + $0x1e0] sm:$0xff]
    %v757 = vld [vmem:[%s1 + $0x1e8] sm:$0xff]
    %v758 = vld [vmem:[%s1 + $0x1f0] sm:$0xff]
    %v759 = vld [vmem:[%s1 + $0x1f8] sm:$0xff]
    %v760 = vld [vmem:[%s1 + $0x200] sm:$0xff]
    %v761 = vld [vmem:[%s1 + $0x208] sm:$0xff]
    %v762 = vld [vmem:[%s1 + $0x210] sm:$0xff]
    %v763 = vld [vmem:[%s1 + $0x218] sm:$0xff]
    %v764 = vld [vmem:[%s1 + $0x220] sm:$0xff]
    %v765 = vld [vmem:[%s1 + $0x228] sm:$0xff]
    %v766 = vld [vmem:[%s1 + $0x230] sm:$0xff]
    %v767 = vld [vmem:[%s1 + $0x238] sm:$0xff]
    %v768 = vld [vmem:[%s1 + $0x240] sm:$0xff]
    %v769 = vld [vmem:[%s1 + $0x248] sm:$0xff]
    %v770 = vld [vmem:[%s1 + $0x250] sm:$0xff]
    %v771 = vld [vmem:[%s1 + $0x258] sm:$0xff]
    %v772 = vld [vmem:[%s1 + $0x260] sm:$0xff]
    %v773 = vld [vmem:[%s1 + $0x268] sm:$0xff]
    %v774 = vld [vmem:[%s1 + $0x270] sm:$0xff]
    %v775 = vld [vmem:[%s1 + $0x278] sm:$0xff]
    %v776 = vld [vmem:[%s1 + $0x280] sm:$0xff]
    %v777 = vld [vmem:[%s1 + $0x288] sm:$0xff]
    %v778 = vld [vmem:[%s1 + $0x290] sm:$0xff]
    %v779 = vld [vmem:[%s1 + $0x298] sm:$0xff]
    %v780 = vld [vmem:[%s1 + $0x2a0] sm:$0xff]
    %v781 = vld [vmem:[%s1 + $0x2a8] sm:$0xff]
    %v782 = vld [vmem:[%s1 + $0x2b0] sm:$0xff]
    %v783 = vld [vmem:[%s1 + $0x2b8] sm:$0xff]
    %v784 = vld [vmem:[%s1 + $0x2c0] sm:$0xff]
    %v785 = vld [vmem:[%s1 + $0x2c8] sm:$0xff]
    %v786 = vld [vmem:[%s1 + $0x2d0] sm:$0xff]
    %v787 = vld [vmem:[%s1 + $0x2d8] sm:$0xff]
    %v788 = vld [vmem:[%s1 + $0x2e0] sm:$0xff]
    %v789 = vld [vmem:[%s1 + $0x2e8] sm:$0xff]
    %v790 = vld [vmem:[%s1 + $0x2f0] sm:$0xff]
    %v791 = vld [vmem:[%s1 + $0x2f8] sm:$0xff]
    %v792 = vld [vmem:[%s1 + $0x300] sm:$0xff]
    %v793 = vld [vmem:[%s1 + $0x308] sm:$0xff]
    %v794 = vld [vmem:[%s1 + $0x310] sm:$0xff]
    %v795 = vld [vmem:[%s1 + $0x318] sm:$0xff]
    %v796 = vld [vmem:[%s1 + $0x320] sm:$0xff]
    %v797 = vld [vmem:[%s1 + $0x328] sm:$0xff]
    %v798 = vld [vmem:[%s1 + $0x330] sm:$0xff]
    %v799 = vld [vmem:[%s1 + $0x338] sm:$0xff]
    %v800 = vld [vmem:[%s1 + $0x340] sm:$0xff]
    %v801 = vld [vmem:[%s1 + $0x348] sm:$0xff]
    %v802 = vld [vmem:[%s1 + $0x350] sm:$0xff]
    %v803 = vld [vmem:[%s1 + $0x358] sm:$0xff]
    %v804 = vld [vmem:[%s1 + $0x360] sm:$0xff]
    %v805 = vld [vmem:[%s1 + $0x368] sm:$0xff]
    %v806 = vld [vmem:[%s1 + $0x370] sm:$0xff]
    %v807 = vld [vmem:[%s1 + $0x378] sm:$0xff]
    %v808 = vld [vmem:[%s1 + $0x380] sm:$0xff]
    %v809 = vld [vmem:[%s1 + $0x388] sm:$0xff]
    %v810 = vld [vmem:[%s1 + $0x390] sm:$0xff]
    %v811 = vld [vmem:[%s1 + $0x398] sm:$0xff]
    %v812 = vld [vmem:[%s1 + $0x3a0] sm:$0xff]
    %v813 = vld [vmem:[%s1 + $0x3a8] sm:$0xff]
    %v814 = vld [vmem:[%s1 + $0x3b0] sm:$0xff]
    %v815 = vld [vmem:[%s1 + $0x3b8] sm:$0xff]
    %v816 = vld [vmem:[%s1 + $0x3c0] sm:$0xff]
    %v817 = vld [vmem:[%s1 + $0x3c8] sm:$0xff]
    %v818 = vld [vmem:[%s1 + $0x3d0] sm:$0xff]
    %v819 = vld [vmem:[%s1 + $0x3d8] sm:$0xff]
    %v820 = vld [vmem:[%s1 + $0x3e0] sm:$0xff]
    %v821 = vld [vmem:[%s1 + $0x3e8] sm:$0xff]
    %v822 = vld [vmem:[%s1 + $0x3f0] sm:$0xff]
    %v823 = vld [vmem:[%s1 + $0x3f8] sm:$0xff]
    %824 = vmatprep.subr.mxu0 0.0
    %825 = vmatpush1.msra.mxu0 %v696
    %826 = vmatprep.subr.mxu0 0.0
    %827 = vmatpush1.msra.mxu0 %v697
    %828 = vmatprep.subr.mxu0 0.0
    %829 = vmatpush1.msra.mxu0 %v698
    %830 = vmatprep.subr.mxu0 0.0
    %831 = vmatpush1.msra.mxu0 %v699
    %832 = vmatprep.subr.mxu0 0.0
    %833 = vmatpush1.msra.mxu0 %v700
    %834 = vmatprep.subr.mxu0 0.0
    %835 = vmatpush1.msra.mxu0 %v701
    %836 = vmatprep.subr.mxu0 0.0
    %837 = vmatpush1.msra.mxu0 %v702
    %838 = vmatprep.subr.mxu0 0.0
    %839 = vmatpush1.msra.mxu0 %v703
    %840 = vmatprep.subr.mxu0 0.0
    %841 = vmatpush1.msra.mxu0 %v704
    %842 = vmatprep.subr.mxu0 0.0
    %843 = vmatpush1.msra.mxu0 %v705
    %844 = vmatprep.subr.mxu0 0.0
    %845 = vmatpush1.msra.mxu0 %v706
    %846 = vmatprep.subr.mxu0 0.0
    %847 = vmatpush1.msra.mxu0 %v707
    %848 = vmatprep.subr.mxu0 0.0
    %849 = vmatpush1.msra.mxu0 %v708
    %850 = vmatprep.subr.mxu0 0.0
    %851 = vmatpush1.msra.mxu0 %v709
    %852 = vmatprep.subr.mxu0 0.0
    %853 = vmatpush1.msra.mxu0 %v710
    %854 = vmatprep.subr.mxu0 0.0
    %855 = vmatpush1.msra.mxu0 %v711
    %856 = vmatprep.subr.mxu0 0.0
    %857 = vmatpush1.msra.mxu0 %v712
    %858 = vmatprep.subr.mxu0 0.0
    %859 = vmatpush1.msra.mxu0 %v713
    %860 = vmatprep.subr.mxu0 0.0
    %861 = vmatpush1.msra.mxu0 %v714
    %862 = vmatprep.subr.mxu0 0.0
    %863 = vmatpush1.msra.mxu0 %v715
    %864 = vmatprep.subr.mxu0 0.0
    %865 = vmatpush1.msra.mxu0 %v716
    %866 = vmatprep.subr.mxu0 0.0
    %867 = vmatpush1.msra.mxu0 %v717
    %868 = vmatprep.subr.mxu0 0.0
    %869 = vmatpush1.msra.mxu0 %v718
    %870 = vmatprep.subr.mxu0 0.0
    %871 = vmatpush1.msra.mxu0 %v719
    %872 = vmatprep.subr.mxu0 0.0
    %873 = vmatpush1.msra.mxu0 %v720
    %874 = vmatprep.subr.mxu0 0.0
    %875 = vmatpush1.msra.mxu0 %v721
    %876 = vmatprep.subr.mxu0 0.0
    %877 = vmatpush1.msra.mxu0 %v722
    %878 = vmatprep.subr.mxu0 0.0
    %879 = vmatpush1.msra.mxu0 %v723
    %880 = vmatprep.subr.mxu0 0.0
    %881 = vmatpush1.msra.mxu0 %v724
    %882 = vmatprep.subr.mxu0 0.0
    %883 = vmatpush1.msra.mxu0 %v725
    %884 = vmatprep.subr.mxu0 0.0
    %885 = vmatpush1.msra.mxu0 %v726
    %886 = vmatprep.subr.mxu0 0.0
    %887 = vmatpush1.msra.mxu0 %v727
    %888 = vmatprep.mubr.f32.mxu0 %v689
    %889 = vmatmul.mubr.f32.gmra.mrb[0].mxu0 %v688
    %v890 = vpop.f32.mrb[0].mxu0
    %v891 = vadd.f32 0.0, %v890
    %v892 = vpop.f32.mrb[0].mxu0
    %893 = vdwg.mxu0
    %894 = vmatprep.subr.mxu0 0.0
    %895 = vmatpush1.msra.mxu0 %v728
    %896 = vmatprep.subr.mxu0 0.0
    %897 = vmatpush1.msra.mxu0 %v729
    %898 = vmatprep.subr.mxu0 0.0
    %899 = vmatpush1.msra.mxu0 %v730
    %900 = vmatprep.subr.mxu0 0.0
    %901 = vmatpush1.msra.mxu0 %v731
    %902 = vmatprep.subr.mxu0 0.0
    %903 = vmatpush1.msra.mxu0 %v732
    %904 = vmatprep.subr.mxu0 0.0
    %905 = vmatpush1.msra.mxu0 %v733
    %906 = vmatprep.subr.mxu0 0.0
    %907 = vmatpush1.msra.mxu0 %v734
    %908 = vmatprep.subr.mxu0 0.0
    %909 = vmatpush1.msra.mxu0 %v735
    %910 = vmatprep.subr.mxu0 0.0
    %911 = vmatpush1.msra.mxu0 %v736
    %912 = vmatprep.subr.mxu0 0.0
    %913 = vmatpush1.msra.mxu0 %v737
    %914 = vmatprep.subr.mxu0 0.0
    %915 = vmatpush1.msra.mxu0 %v738
    %916 = vmatprep.subr.mxu0 0.0
    %917 = vmatpush1.msra.mxu0 %v739
    %918 = vmatprep.subr.mxu0 0.0
    %919 = vmatpush1.msra.mxu0 %v740
    %920 = vmatprep.subr.mxu0 0.0
    %921 = vmatpush1.msra.mxu0 %v741
    %922 = vmatprep.subr.mxu0 0.0
    %923 = vmatpush1.msra.mxu0 %v742
    %924 = vmatprep.subr.mxu0 0.0
    %925 = vmatpush1.msra.mxu0 %v743
    %926 = vmatprep.subr.mxu0 0.0
    %927 = vmatpush1.msra.mxu0 %v744
    %928 = vmatprep.subr.mxu0 0.0
    %929 = vmatpush1.msra.mxu0 %v745
    %930 = vmatprep.subr.mxu0 0.0
    %931 = vmatpush1.msra.mxu0 %v746
    %932 = vmatprep.subr.mxu0 0.0
    %933 = vmatpush1.msra.mxu0 %v747
    %934 = vmatprep.subr.mxu0 0.0
    %935 = vmatpush1.msra.mxu0 %v748
    %936 = vmatprep.subr.mxu0 0.0
    %937 = vmatpush1.msra.mxu0 %v749
    %938 = vmatprep.subr.mxu0 0.0
    %939 = vmatpush1.msra.mxu0 %v750
    %940 = vmatprep.subr.mxu0 0.0
    %941 = vmatpush1.msra.mxu0 %v751
    %942 = vmatprep.subr.mxu0 0.0
    %943 = vmatpush1.msra.mxu0 %v752
    %944 = vmatprep.subr.mxu0 0.0
    %945 = vmatpush1.msra.mxu0 %v753
    %946 = vmatprep.subr.mxu0 0.0
    %947 = vmatpush1.msra.mxu0 %v754
    %948 = vmatprep.subr.mxu0 0.0
    %949 = vmatpush1.msra.mxu0 %v755
    %950 = vmatprep.subr.mxu0 0.0
    %951 = vmatpush1.msra.mxu0 %v756
    %952 = vmatprep.subr.mxu0 0.0
    %953 = vmatpush1.msra.mxu0 %v757
    %954 = vmatprep.subr.mxu0 0.0
    %955 = vmatpush1.msra.mxu0 %v758
    %956 = vmatprep.subr.mxu0 0.0
    %957 = vmatpush1.msra.mxu0 %v759
    %958 = vmatprep.mubr.f32.mxu0 %v691
    %959 = vmatmul.mubr.f32.gmra.mrb[0].mxu0 %v690
    %v960 = vpop.f32.mrb[0].mxu0
    %v961 = vadd.f32 %v891, %v960
    %v962 = vpop.f32.mrb[0].mxu0
    %963 = vdwg.mxu0
    %964 = vmatprep.subr.mxu0 0.0
    %965 = vmatpush1.msra.mxu0 %v760
    %966 = vmatprep.subr.mxu0 0.0
    %967 = vmatpush1.msra.mxu0 %v761
    %968 = vmatprep.subr.mxu0 0.0
    %969 = vmatpush1.msra.mxu0 %v762
    %970 = vmatprep.subr.mxu0 0.0
    %971 = vmatpush1.msra.mxu0 %v763
    %972 = vmatprep.subr.mxu0 0.0
    %973 = vmatpush1.msra.mxu0 %v764
    %974 = vmatprep.subr.mxu0 0.0
    %975 = vmatpush1.msra.mxu0 %v765
    %976 = vmatprep.subr.mxu0 0.0
    %977 = vmatpush1.msra.mxu0 %v766
    %978 = vmatprep.subr.mxu0 0.0
    %979 = vmatpush1.msra.mxu0 %v767
    %980 = vmatprep.subr.mxu0 0.0
    %981 = vmatpush1.msra.mxu0 %v768
    %982 = vmatprep.subr.mxu0 0.0
    %983 = vmatpush1.msra.mxu0 %v769
    %984 = vmatprep.subr.mxu0 0.0
    %985 = vmatpush1.msra.mxu0 %v770
    %986 = vmatprep.subr.mxu0 0.0
    %987 = vmatpush1.msra.mxu0 %v771
    %988 = vmatprep.subr.mxu0 0.0
    %989 = vmatpush1.msra.mxu0 %v772
    %990 = vmatprep.subr.mxu0 0.0
    %991 = vmatpush1.msra.mxu0 %v773
    %992 = vmatprep.subr.mxu0 0.0
    %993 = vmatpush1.msra.mxu0 %v774
    %994 = vmatprep.subr.mxu0 0.0
    %995 = vmatpush1.msra.mxu0 %v775
    %996 = vmatprep.subr.mxu0 0.0
    %997 = vmatpush1.msra.mxu0 %v776
    %998 = vmatprep.subr.mxu0 0.0
    %999 = vmatpush1.msra.mxu0 %v777
    %1000 = vmatprep.subr.mxu0 0.0
    %1001 = vmatpush1.msra.mxu0 %v778
    %1002 = vmatprep.subr.mxu0 0.0
    %1003 = vmatpush1.msra.mxu0 %v779
    %1004 = vmatprep.subr.mxu0 0.0
    %1005 = vmatpush1.msra.mxu0 %v780
    %1006 = vmatprep.subr.mxu0 0.0
    %1007 = vmatpush1.msra.mxu0 %v781
    %1008 = vmatprep.subr.mxu0 0.0
    %1009 = vmatpush1.msra.mxu0 %v782
    %1010 = vmatprep.subr.mxu0 0.0
    %1011 = vmatpush1.msra.mxu0 %v783
    %1012 = vmatprep.subr.mxu0 0.0
    %1013 = vmatpush1.msra.mxu0 %v784
    %1014 = vmatprep.subr.mxu0 0.0
    %1015 = vmatpush1.msra.mxu0 %v785
    %1016 = vmatprep.subr.mxu0 0.0
    %1017 = vmatpush1.msra.mxu0 %v786
    %1018 = vmatprep.subr.mxu0 0.0
    %1019 = vmatpush1.msra.mxu0 %v787
    %1020 = vmatprep.subr.mxu0 0.0
    %1021 = vmatpush1.msra.mxu0 %v788
    %1022 = vmatprep.subr.mxu0 0.0
    %1023 = vmatpush1.msra.mxu0 %v789
    %1024 = vmatprep.subr.mxu0 0.0
    %1025 = vmatpush1.msra.mxu0 %v790
    %1026 = vmatprep.subr.mxu0 0.0
    %1027 = vmatpush1.msra.mxu0 %v791
    %1028 = vmatprep.mubr.f32.mxu0 %v693
    %1029 = vmatmul.mubr.f32.gmra.mrb[0].mxu0 %v692
    %v1030 = vpop.f32.mrb[0].mxu0
    %v1031 = vadd.f32 %v961, %v1030
    %v1032 = vpop.f32.mrb[0].mxu0
    %1033 = vdwg.mxu0
    %1034 = vmatprep.subr.mxu0 0.0
    %1035 = vmatpush1.msra.mxu0 %v792
    %1036 = vmatprep.subr.mxu0 0.0
    %1037 = vmatpush1.msra.mxu0 %v793
    %1038 = vmatprep.subr.mxu0 0.0
    %1039 = vmatpush1.msra.mxu0 %v794
    %1040 = vmatprep.subr.mxu0 0.0
    %1041 = vmatpush1.msra.mxu0 %v795
    %1042 = vmatprep.subr.mxu0 0.0
    %1043 = vmatpush1.msra.mxu0 %v796
    %1044 = vmatprep.subr.mxu0 0.0
    %1045 = vmatpush1.msra.mxu0 %v797
    %1046 = vmatprep.subr.mxu0 0.0
    %1047 = vmatpush1.msra.mxu0 %v798
    %1048 = vmatprep.subr.mxu0 0.0
    %1049 = vmatpush1.msra.mxu0 %v799
    %1050 = vmatprep.subr.mxu0 0.0
    %1051 = vmatpush1.msra.mxu0 %v800
    %1052 = vmatprep.subr.mxu0 0.0
    %1053 = vmatpush1.msra.mxu0 %v801
    %1054 = vmatprep.subr.mxu0 0.0
    %1055 = vmatpush1.msra.mxu0 %v802
    %1056 = vmatprep.subr.mxu0 0.0
    %1057 = vmatpush1.msra.mxu0 %v803
    %1058 = vmatprep.subr.mxu0 0.0
    %1059 = vmatpush1.msra.mxu0 %v804
    %1060 = vmatprep.subr.mxu0 0.0
    %1061 = vmatpush1.msra.mxu0 %v805
    %1062 = vmatprep.subr.mxu0 0.0
    %1063 = vmatpush1.msra.mxu0 %v806
    %1064 = vmatprep.subr.mxu0 0.0
    %1065 = vmatpush1.msra.mxu0 %v807
    %1066 = vmatprep.subr.mxu0 0.0
    %1067 = vmatpush1.msra.mxu0 %v808
    %1068 = vmatprep.subr.mxu0 0.0
    %1069 = vmatpush1.msra.mxu0 %v809
    %1070 = vmatprep.subr.mxu0 0.0
    %1071 = vmatpush1.msra.mxu0 %v810
    %1072 = vmatprep.subr.mxu0 0.0
    %1073 = vmatpush1.msra.mxu0 %v811
    %1074 = vmatprep.subr.mxu0 0.0
    %1075 = vmatpush1.msra.mxu0 %v812
    %1076 = vmatprep.subr.mxu0 0.0
    %1077 = vmatpush1.msra.mxu0 %v813
    %1078 = vmatprep.subr.mxu0 0.0
    %1079 = vmatpush1.msra.mxu0 %v814
    %1080 = vmatprep.subr.mxu0 0.0
    %1081 = vmatpush1.msra.mxu0 %v815
    %1082 = vmatprep.subr.mxu0 0.0
    %1083 = vmatpush1.msra.mxu0 %v816
    %1084 = vmatprep.subr.mxu0 0.0
    %1085 = vmatpush1.msra.mxu0 %v817
    %1086 = vmatprep.subr.mxu0 0.0
    %1087 = vmatpush1.msra.mxu0 %v818
    %1088 = vmatprep.subr.mxu0 0.0
    %1089 = vmatpush1.msra.mxu0 %v819
    %1090 = vmatprep.subr.mxu0 0.0
    %1091 = vmatpush1.msra.mxu0 %v820
    %1092 = vmatprep.subr.mxu0 0.0
    %1093 = vmatpush1.msra.mxu0 %v821
    %1094 = vmatprep.subr.mxu0 0.0
    %1095 = vmatpush1.msra.mxu0 %v822
    %1096 = vmatprep.subr.mxu0 0.0
    %1097 = vmatpush1.msra.mxu0 %v823
    %1098 = vmatprep.mubr.f32.mxu0 %v695
    %1099 = vmatmul.mubr.f32.gmra.mrb[0].mxu0 %v694
    %v1100 = vpop.f32.mrb[0].mxu0
    %v1101 = vadd.f32 %v1031, %v1100
    %v1102 = vpop.f32.mrb[0].mxu0
    %1103 = vdwg.mxu0
    %v1104 = vmul.f32 %v1101, 0.0625
    %v1105 = vld [vmem:[%s3 + $0x20] sm:$0xff]
    %v1106 = vld [vmem:[%s3 + $0x28] sm:$0xff]
    %v1107 = vld [vmem:[%s3 + $0x30] sm:$0xff]
    %v1108 = vld [vmem:[%s3 + $0x38] sm:$0xff]
    %v1110 = vsel %vm78, %v1104, 0
    %1112 = vmatprep.subr.mxu0 0.0
    %1113 = vmatpush1.msra.mxu0 %v1105
    %1114 = vmatprep.subr.mxu0 0.0
    %1115 = vmatpush1.msra.mxu0 %v1106
    %1116 = vmatprep.subr.mxu0 0.0
    %1117 = vmatpush1.msra.mxu0 %v1107
    %1118 = vmatprep.subr.mxu0 0.0
    %1119 = vmatpush1.msra.mxu0 %v1108
    %1120 = vmatprep.subr.mxu0 0.0
    %1121 = vmatpush1.msra.mxu0 0.0
    %1122 = vmatprep.subr.mxu0 0.0
    %1123 = vmatpush1.msra.mxu0 0.0
    %1124 = vmatprep.subr.mxu0 0.0
    %1125 = vmatpush1.msra.mxu0 0.0
    %1126 = vmatprep.subr.mxu0 0.0
    %1127 = vmatpush1.msra.mxu0 0.0
    %1128 = vmatprep.subr.mxu0 0.0
    %1129 = vmatpush1.msra.mxu0 0.0
    %1130 = vmatprep.subr.mxu0 0.0
    %1131 = vmatpush1.msra.mxu0 0.0
    %1132 = vmatprep.subr.mxu0 0.0
    %1133 = vmatpush1.msra.mxu0 0.0
    %1134 = vmatprep.subr.mxu0 0.0
    %1135 = vmatpush1.msra.mxu0 0.0
    %1136 = vmatprep.subr.mxu0 0.0
    %1137 = vmatpush1.msra.mxu0 0.0
    %1138 = vmatprep.subr.mxu0 0.0
    %1139 = vmatpush1.msra.mxu0 0.0
    %1140 = vmatprep.subr.mxu0 0.0
    %1141 = vmatpush1.msra.mxu0 0.0
    %1142 = vmatprep.subr.mxu0 0.0
    %1143 = vmatpush1.msra.mxu0 0.0
    %1144 = vmatprep.subr.mxu0 0.0
    %1145 = vmatpush1.msra.mxu0 0.0
    %1146 = vmatprep.subr.mxu0 0.0
    %1147 = vmatpush1.msra.mxu0 0.0
    %1148 = vmatprep.subr.mxu0 0.0
    %1149 = vmatpush1.msra.mxu0 0.0
    %1150 = vmatprep.subr.mxu0 0.0
    %1151 = vmatpush1.msra.mxu0 0.0
    %1152 = vmatprep.subr.mxu0 0.0
    %1153 = vmatpush1.msra.mxu0 0.0
    %1154 = vmatprep.subr.mxu0 0.0
    %1155 = vmatpush1.msra.mxu0 0.0
    %1156 = vmatprep.subr.mxu0 0.0
    %1157 = vmatpush1.msra.mxu0 0.0
    %1158 = vmatprep.subr.mxu0 0.0
    %1159 = vmatpush1.msra.mxu0 0.0
    %1160 = vmatprep.subr.mxu0 0.0
    %1161 = vmatpush1.msra.mxu0 0.0
    %1162 = vmatprep.subr.mxu0 0.0
    %1163 = vmatpush1.msra.mxu0 0.0
    %1164 = vmatprep.subr.mxu0 0.0
    %1165 = vmatpush1.msra.mxu0 0.0
    %1166 = vmatprep.subr.mxu0 0.0
    %1167 = vmatpush1.msra.mxu0 0.0
    %1168 = vmatprep.subr.mxu0 0.0
    %1169 = vmatpush1.msra.mxu0 0.0
    %1170 = vmatprep.subr.mxu0 0.0
    %1171 = vmatpush1.msra.mxu0 0.0
    %1172 = vmatprep.subr.mxu0 0.0
    %1173 = vmatpush1.msra.mxu0 0.0
    %1174 = vmatprep.subr.mxu0 0.0
    %1175 = vmatpush1.msra.mxu0 0.0
    %1176 = vmatprep.mubr.f32.mxu0 0.0
    %1177 = vmatmul.mubr.f32.gmra.mrb[0].mxu0 %v1110
    %v1178 = vpop.f32.mrb[0].mxu0
    %v1179 = vadd.f32 %v91, %v1178
    %v1180 = vpop.f32.mrb[0].mxu0
    %1181 = vdwg.mxu0
    %v1182 = vld [vmem:[%s4] sm:$0x1]
    %v1184 = vlaneseq
    %v1185 = vshrl.u32 %v1184, 7
    %v1186 = vsub.s32 0, %v1185
    %v1187 = vrot.slane %v1182, %v1186
    %v1189 = vadd.f32 %v1179, %v1187
    %v1190 = vmax.f32 %v1189, 0.0
    %1191 = vxpose.xlu0.b32.start [1/16] %v1190, 128
    %1192 = vxpose.xlu0.b32.cont [2/16] 0.0, 128
    %1193 = vxpose.xlu0.b32.cont [3/16] 0.0, 128
    %1194 = vxpose.xlu0.b32.cont [4/16] 0.0, 128
    %1195 = vxpose.xlu0.b32.cont [5/16] 0.0, 128
    %1196 = vxpose.xlu0.b32.cont [6/16] 0.0, 128
    %1197 = vxpose.xlu0.b32.cont [7/16] 0.0, 128
    %1198 = vxpose.xlu0.b32.cont [8/16] 0.0, 128
    %1199 = vxpose.xlu0.b32.cont [9/16] 0.0, 128
    %1200 = vxpose.xlu0.b32.cont [10/16] 0.0, 128
    %1201 = vxpose.xlu0.b32.cont [11/16] 0.0, 128
    %1202 = vxpose.xlu0.b32.cont [12/16] 0.0, 128
    %1203 = vxpose.xlu0.b32.cont [13/16] 0.0, 128
    %1204 = vxpose.xlu0.b32.cont [14/16] 0.0, 128
    %1205 = vxpose.xlu0.b32.cont [15/16] 0.0, 128
    %1206 = vxpose.xlu0.b32.end [16/16] 0.0, 128
    %v1207 = vpop.trf.xlu0
    %v1208 = vpop.trf.xlu0
    %v1209 = vpop.trf.xlu0
    %v1210 = vpop.trf.xlu0
    %v1211 = vpop.trf.xlu0
    %v1212 = vpop.trf.xlu0
    %v1213 = vpop.trf.xlu0
    %v1214 = vpop.trf.xlu0
    %v1215 = vpop.trf.xlu0
    %v1216 = vpop.trf.xlu0
    %v1217 = vpop.trf.xlu0
    %v1218 = vpop.trf.xlu0
    %v1219 = vpop.trf.xlu0
    %v1220 = vpop.trf.xlu0
    %v1221 = vpop.trf.xlu0
    %v1222 = vpop.trf.xlu0
    %v1223 = vld [vmem:[%s5] sm:$0xff]
    %v1224 = vld [vmem:[%s5 + $0x8] sm:$0xff]
    %v1225 = vld [vmem:[%s5 + $0x10] sm:$0xff]
    %v1226 = vld [vmem:[%s5 + $0x18] sm:$0xff]
    %1228 = vset.pattern.permute.xlu0 0
    %1229 = vperm.xlu0 %1228, %v1223
    %v1230 = vpop.permute.xlu0 %1229
    %1233 = vset.pattern.permute.xlu0 0
    %1234 = vperm.xlu0 %1233, %v1224
    %v1235 = vpop.permute.xlu0 %1234
    %1238 = vset.pattern.permute.xlu0 0
    %1239 = vperm.xlu0 %1238, %v1225
    %v1240 = vpop.permute.xlu0 %1239
    %1243 = vset.pattern.permute.xlu0 0
    %1244 = vperm.xlu0 %1243, %v1226
    %v1245 = vpop.permute.xlu0 %1244
    %v1247 = vmul.f32 %v1207, %v1230
    %v1248 = vmul.f32 %v1208, %v1235
    %v1249 = vmul.f32 %v1209, %v1240
    %v1250 = vmul.f32 %v1210, %v1245
    %vm1251 = vcmask 64512
    %v1252 = vsel %vm1251, %v1247, 0.0
    %v1253 = vsel %vm1251, %v1248, 0.0
    %v1254 = vadd.f32 %v1252, %v1253
    %v1255 = vsel %vm1251, %v1249, 0.0
    %v1256 = vadd.f32 %v1254, %v1255
    %v1257 = vsel %vm1251, %v1250, 0.0
    %v1258 = vadd.f32 %v1256, %v1257
    %v1259 = vrot.slane %v1258, 4
    %v1260 = vadd.f32 %v1258, %v1259
    %v1261 = vrot.slane %v1260, 2
    %v1262 = vadd.f32 %v1260, %v1261
    %v1263 = vrot.slane %v1262, 1
    %v1264 = vadd.f32 %v1262, %v1263
    %v1265 = vld [vmem:[#allocation2] sm:$0x1]
    %1267 = vset.pattern.permute.xlu0 0
    %1268 = vperm.xlu0 %1267, %v1265
    %v1269 = vpop.permute.xlu0 %1268
    %v1271 = vlaneseq
    %v1272 = vshrl.u32 %v1271, 7
    %v1273 = vsub.s32 0, %v1272
    %v1274 = vrot.slane %v1269, %v1273
    %v1275 = vadd.f32 %v1264, %v1274
    %v1276 = vsel %vm1251, %v1275, -inf
    %1277 = vmax.xlane.f32.xlu0 %v1276
    %v1278 = vpop.xlane.xlu0 %1277
    %v1279 = vsub.f32 %v1275, %v1278
    %v1280 = vmul.f32 %v1279, 1.442695
    %v1281 = vpow.pop %v1280
    %v1282 = vsel %vm1251, %v1281, 0.0
    %1283 = vadd.xlane.f32.xlu0 %v1282
    %v1284 = vpop.xlane.xlu0 %1283
    %v1285 = vrcp.pop %v1284
    %v1286 = vmul.f32 %v1281, %v1285
    %vm1287 = vcmask 57344
    %1288 = vst.msk [vmem:[#allocation4] sm:$0x1] %vm1287, %v1286
    // Predicated region
    $region46: #{tpu_custom_call.1} parent=1 // pred_check
      _
    $region47: #{tpu_custom_call.1} parent=1 // pred_check_branch
      %1290 = sbr.rel (0) target = $region49
    $region48: #{tpu_custom_call.1} parent=1 // pred_region
      %s1292 = ssub.s32 16, 16
      %1293 = vsyncadd [#allocation5], %s1292
      %s1295 = sshll.u32 [#allocation4], 4
      %s1296 = int_to_ptr.vmem [resolvable:$true] %s1295
      %1298 = dma.vmem_to_hbm [thread:$0]  %s1296, 16, %s11, [#allocation5]
    $region49: #{tpu_custom_call.1} parent=1 // pred_fallthru
      _
    // Predicated region
    $region50: #{tpu_custom_call.1} parent=1 // pred_check
      _
    $region51: #{tpu_custom_call.1} parent=1 // pred_check_branch
      %1300 = sbr.rel (0) target = $region53
    $region52: #{tpu_custom_call.1} parent=1 // pred_region
      %s1302 = ssub.s32 16, 16
      %1303 = vsyncadd [#allocation7], %s1302
      %s1305 = sshll.u32 [#allocation6], 4
      %s1306 = int_to_ptr.vmem [resolvable:$true] %s1305
      %1308 = dma.vmem_to_hbm [thread:$0]  %s1306, 16, %s12, [#allocation7]
    $region53: #{tpu_custom_call.1} parent=1 // pred_fallthru
      _
    // Predicated region
    $region54: #{tpu_custom_call.1} parent=1 // pred_check
      _
    $region55: #{tpu_custom_call.1} parent=1 // pred_check_branch
      %1310 = sbr.rel (0) target = $region57
    $region56: #{tpu_custom_call.1} parent=1 // pred_region
      %1311 = dma.done [#allocation5], 16
    $region57: #{tpu_custom_call.1} parent=1 // pred_fallthru
      _
    // Predicated region
    $region58: #{tpu_custom_call.1} parent=1 // pred_check
      _
    $region59: #{tpu_custom_call.1} parent=1 // pred_check_branch
      %1313 = sbr.rel (0) target = $region61
    $region60: #{tpu_custom_call.1} parent=1 // pred_region
      %1314 = dma.done [#allocation7], 16
    $region61: #{tpu_custom_call.1} parent=1 // pred_fallthru
      _
    %1315 = vsyncpa [#allocation5], 1
    %1316 = vsyncpa [#allocation7], 1

</llo_original>
